<compile_context>
chip_gen: v7x
topology: tpu7x:2x2x1
jax: 0.10.0
libtpu: 0.0.40
codegen_flags: <defaults>
</compile_context>

<pallas_src>
import jax
import jax.numpy as jnp
from jax.experimental import pallas as pl
from jax.experimental.pallas import tpu as pltpu


# ------------------------------ configuration ------------------------------ #

def _round_up(v, m):
    return ((v + m - 1) // m) * m


def _vmem_budget_and_limit():
    """Generation-aware VMEM sizing (v5e/v6e: 128 MiB, v7x: 64 MiB per TC)."""
    try:
        cap = int(pltpu.get_tpu_info().vmem_capacity_bytes)
    except Exception:  # query unavailable -> assume the smallest (v7x per-TC)
        cap = 64 * 1024 * 1024
    cap = max(cap, 32 * 1024 * 1024)
    budget = int(cap * 0.60)   # tile-selection budget (headroom for Mosaic
                               # internal scratch and f32 temporaries)
    limit = int(cap * 0.85)    # scoped-VMEM limit handed to the compiler
    return budget, limit


def _choose_tiles(n_pad, x_w, h_pad, vmem_budget):
    """Pick (TM, TK): 128-multiples dividing n_pad that fit the VMEM budget."""
    def usage(tm, tk):
        a = 2 * 2 * tm * tk                           # A_pos+A_neg, 2 bufs, i8
        xk = 2 * tk * x_w * 2                         # x K-tile, 2 bufs, bf16
        xr = 2 * tm * x_w * 2                         # x row-tile, 2 bufs, bf16
        w = 3 * x_w * 2 * h_pad * 2 + 2 * h_pad * 4   # packed weights+b, 1 buf
        o = 2 * tm * 2 * h_pad * 4                    # out tile, 2 bufs
        acc = 2 * tm * x_w * 4                        # f32 P/Q scratch
        tmp = 4 * tm * max(tk, x_w, 2 * h_pad) * 4    # matmul temps headroom
        return a + xk + xr + w + o + acc + tmp

    # TM capped at n_pad // 2 so both v7x TensorCores get at least one row tile.
    tm_cands = [t for t in (512, 256, 128)
                if n_pad % t == 0 and t <= max(n_pad // 2, 128)]
    tk_cands = [t for t in (4096, 2048, 1024, 512, 256, 128) if n_pad % t == 0]
    for tm in tm_cands:
        for tk in tk_cands:
            if usage(tm, tk) <= vmem_budget:
                return tm, tk
    return 128, 128  # n_pad is a multiple of 256, so 128 always divides


# ------------------------------ Pallas kernel ------------------------------- #

def _signed_conv_kernel(a_pos_ref, a_neg_ref, x_k_ref, x_row_ref,
                        inv_pos_ref, inv_neg_ref,
                        wp_ref, wq_ref, wx_ref, b_ref,
                        out_ref, p_acc, q_acc):
    """One (row tile, K tile) step of out = relu(P@Wp + Q@Wq + X@Wx + b)."""
    k = pl.program_id(1)

    @pl.when(k == 0)
    def _():
        p_acc[...] = jnp.zeros_like(p_acc)
        q_acc[...] = jnp.zeros_like(q_acc)

    x_k = x_k_ref[...]                                     # (TK, x_w) bf16
    p_acc[...] += jnp.dot(a_pos_ref[...].astype(jnp.bfloat16), x_k,
                          preferred_element_type=jnp.float32)
    q_acc[...] += jnp.dot(a_neg_ref[...].astype(jnp.bfloat16), x_k,
                          preferred_element_type=jnp.float32)

    @pl.when(k == pl.num_programs(1) - 1)
    def _():
        # Exact 1/in-degree normalization in f32 (A holds raw edge counts).
        p = (p_acc[...] * inv_pos_ref[...]).astype(jnp.bfloat16)
        q = (q_acc[...] * inv_neg_ref[...]).astype(jnp.bfloat16)
        h = jnp.dot(p, wp_ref[...], preferred_element_type=jnp.float32)
        h = h + jnp.dot(q, wq_ref[...], preferred_element_type=jnp.float32)
        h = h + jnp.dot(x_row_ref[...], wx_ref[...],
                        preferred_element_type=jnp.float32)
        h = h + b_ref[...]
        out_ref[...] = jnp.maximum(h, 0.0).astype(out_ref.dtype)  # single
        # lane-dense 2*H_pad-wide store (both heads at once)


def _run_signed_conv(a_pos, a_neg, x, inv_pos, inv_neg, wp, wq, wx, b,
                     out_dtype, vmem_budget, vmem_limit):
    n_pad = a_pos.shape[0]
    x_w = x.shape[1]
    h2 = wp.shape[1]                       # 2 * H_pad
    h_pad = h2 // 2
    tm, tk = _choose_tiles(n_pad, x_w, h_pad, vmem_budget)
    grid = (n_pad // tm, n_pad // tk)

    flops = int(4 * n_pad * n_pad * x_w + 6 * n_pad * x_w * h2)
    bytes_accessed = int(2 * n_pad * n_pad                       # A (int8)
                         + 2 * n_pad * x_w * 2                   # x (two streams)
                         + n_pad * h2 * jnp.dtype(out_dtype).itemsize
                         + 3 * x_w * h2 * 2 + h2 * 4             # weights + b
                         + 2 * n_pad * 4)                        # 1/deg vectors

    return pl.pallas_call(
        _signed_conv_kernel,
        out_shape=jax.ShapeDtypeStruct((n_pad, h2), out_dtype),
        grid=grid,
        in_specs=[
            pl.BlockSpec((tm, tk), lambda i, k: (i, k)),        # A_pos counts
            pl.BlockSpec((tm, tk), lambda i, k: (i, k)),        # A_neg counts
            pl.BlockSpec((tk, x_w), lambda i, k: (k, 0)),       # x (K stream)
            pl.BlockSpec((tm, x_w), lambda i, k: (i, 0)),       # x (self rows)
            pl.BlockSpec((tm, 1), lambda i, k: (i, 0)),         # 1/deg_pos
            pl.BlockSpec((tm, 1), lambda i, k: (i, 0)),         # 1/deg_neg
            pl.BlockSpec((x_w, h2), lambda i, k: (0, 0),
                         pipeline_mode=pl.Buffered(1)),          # Wp
            pl.BlockSpec((x_w, h2), lambda i, k: (0, 0),
                         pipeline_mode=pl.Buffered(1)),          # Wq
            pl.BlockSpec((x_w, h2), lambda i, k: (0, 0),
                         pipeline_mode=pl.Buffered(1)),          # Wx
            pl.BlockSpec((1, h2), lambda i, k: (0, 0),
                         pipeline_mode=pl.Buffered(1)),          # bias
        ],
        out_specs=pl.BlockSpec((tm, h2), lambda i, k: (i, 0)),
        scratch_shapes=[pltpu.VMEM((tm, x_w), jnp.float32),      # P accumulator
                        pltpu.VMEM((tm, x_w), jnp.float32)],     # Q accumulator
        compiler_params=pltpu.CompilerParams(
            dimension_semantics=("parallel", "arbitrary"),
            vmem_limit_bytes=vmem_limit),
        cost_estimate=pl.CostEstimate(flops=flops, transcendentals=0,
                                      bytes_accessed=bytes_accessed),
    )(a_pos, a_neg, x, x, inv_pos, inv_neg, wp, wq, wx, b)


# ------------------------------ glue (plain JAX) ---------------------------- #

def _build_adj_counts(edge_index, n_pad):
    """int8 edge-count matrix C[i, j] = #(j->i) and f32 1/max(in_deg, 1)."""
    src, dst = edge_index[0], edge_index[1]
    counts = jnp.zeros((n_pad, n_pad), jnp.int32).at[dst, src].add(1)
    deg = jnp.sum(counts, axis=1, keepdims=True).astype(jnp.float32)
    inv_deg = 1.0 / jnp.maximum(deg, 1.0)                  # (n_pad, 1) f32
    return counts.astype(jnp.int8), inv_deg


def _init_linear(key, fan_in, fan_out):
    """torch.nn.Linear.reset_parameters: U(-1/sqrt(fan_in), 1/sqrt(fan_in))."""
    bound = 1.0 / jnp.sqrt(jnp.float32(fan_in))
    k_w, k_b = jax.random.split(key)
    w = jax.random.uniform(k_w, (fan_in, fan_out), jnp.float32, -bound, bound)
    b = jax.random.uniform(k_b, (1, fan_out), jnp.float32, -bound, bound)
    return w, b


def _pack_first(wp, bp, wn, bn, f, f_pad, h, h_pad):
    """Pack first_aggr Linear(2F->h) pair into block mats of shape (F_pad, 2H_pad)."""
    h2 = 2 * h_pad
    Wp = jnp.zeros((f_pad, h2), jnp.float32).at[:f, :h].set(wp[:f])
    Wq = jnp.zeros((f_pad, h2), jnp.float32).at[:f, h_pad:h_pad + h].set(wn[:f])
    Wx = jnp.zeros((f_pad, h2), jnp.float32)
    Wx = Wx.at[:f, :h].set(wp[f:])
    Wx = Wx.at[:f, h_pad:h_pad + h].set(wn[f:])
    b = jnp.zeros((1, h2), jnp.float32)
    b = b.at[:, :h].set(bp).at[:, h_pad:h_pad + h].set(bn)
    return (Wp.astype(jnp.bfloat16), Wq.astype(jnp.bfloat16),
            Wx.astype(jnp.bfloat16), b)


def _pack_rest(wp, bp, wn, bn, h, h_pad):
    """Pack non-first Linear(3h->h) pair into block mats of shape (2H_pad, 2H_pad)."""
    h2 = 2 * h_pad
    # pos head uses [mean_pos(x1), mean_neg(x2), x1]; neg head uses
    # [mean_pos(x2), mean_neg(x1), x2].  P = A_pos@x, Q = A_neg@x (full width).
    Wp = jnp.zeros((h2, h2), jnp.float32)
    Wp = Wp.at[:h, :h].set(wp[:h])                                 # p1 -> pos
    Wp = Wp.at[h_pad:h_pad + h, h_pad:h_pad + h].set(wn[:h])       # p2 -> neg
    Wq = jnp.zeros((h2, h2), jnp.float32)
    Wq = Wq.at[h_pad:h_pad + h, :h].set(wp[h:2 * h])               # n2 -> pos
    Wq = Wq.at[:h, h_pad:h_pad + h].set(wn[h:2 * h])               # n1 -> neg
    Wx = jnp.zeros((h2, h2), jnp.float32)
    Wx = Wx.at[:h, :h].set(wp[2 * h:])                             # x1 -> pos
    Wx = Wx.at[h_pad:h_pad + h, h_pad:h_pad + h].set(wn[2 * h:])   # x2 -> neg
    b = jnp.zeros((1, h2), jnp.float32)
    b = b.at[:, :h].set(bp).at[:, h_pad:h_pad + h].set(bn)
    return (Wp.astype(jnp.bfloat16), Wq.astype(jnp.bfloat16),
            Wx.astype(jnp.bfloat16), b)


class SignedGCNPallas:
    def __init__(self, in_channels, hidden_channels, num_layers, lamb=5.0,
                 key=jax.random.PRNGKey(0)):
        self.in_channels = in_channels
        self.hidden_channels = hidden_channels
        self.lamb = lamb
        h = hidden_channels // 2
        self.h = h
        self.h_pad = _round_up(max(h, 1), 128)
        self.f_pad = _round_up(max(in_channels, 1), 128)

        keys = jax.random.split(key, 2 * num_layers)
        wp, bp = _init_linear(keys[0], 2 * in_channels, h)
        wn, bn = _init_linear(keys[1], 2 * in_channels, h)
        self.conv1 = _pack_first(wp, bp, wn, bn, in_channels, self.f_pad,
                                 h, self.h_pad)
        self.convs = []
        for i in range(num_layers - 1):
            wp, bp = _init_linear(keys[2 + 2 * i], 3 * h, h)
            wn, bn = _init_linear(keys[3 + 2 * i], 3 * h, h)
            self.convs.append(_pack_rest(wp, bp, wn, bn, h, self.h_pad))

    def forward(self, x, pos_edge_index, neg_edge_index):
        n = x.shape[0]
        h, h_pad, f_pad = self.h, self.h_pad, self.f_pad
        n_pad = _round_up(max(n, 1), 256)       # decoupled from the row tile

        a_pos, inv_pos = _build_adj_counts(pos_edge_index, n_pad)
        a_neg, inv_neg = _build_adj_counts(neg_edge_index, n_pad)

        x_p = jnp.zeros((n_pad, f_pad), jnp.float32)
        x_p = x_p.at[:n, :x.shape[1]].set(x).astype(jnp.bfloat16)

        budget, limit = _vmem_budget_and_limit()
        layers = [self.conv1] + list(self.convs)
        for li, (wp, wq, wx, b) in enumerate(layers):
            last = li == len(layers) - 1
            out_dtype = jnp.float32 if last else jnp.bfloat16
            x_p = _run_signed_conv(a_pos, a_neg, x_p, inv_pos, inv_neg,
                                   wp, wq, wx, b, out_dtype, budget, limit)

        # un-pad: [pos head | neg head] -> (n, 2h) == (n, hidden_channels)
        return jnp.concatenate([x_p[:n, :h], x_p[:n, h_pad:h_pad + h]], axis=1)


# ----------------------------------- main ----------------------------------- #

if __name__ == "__main__":
    key = jax.random.PRNGKey(0)
    k_x, k_pe, k_ne, k_model = jax.random.split(key, 4)

    num_nodes = 32
    in_channels = 8
    hidden_channels = 32
    num_layers = 3
    num_pos_edges = 48
    num_neg_edges = 48

    x = jax.random.normal(k_x, (num_nodes, in_channels), jnp.float32)
    pos_edge_index = jax.random.randint(k_pe, (2, num_pos_edges), 0, num_nodes,
                                        dtype=jnp.int32)
    neg_edge_index = jax.random.randint(k_ne, (2, num_neg_edges), 0, num_nodes,
                                        dtype=jnp.int32)

    model = SignedGCNPallas(in_channels, hidden_channels, num_layers,
                            lamb=5.0, key=k_model)
    out = model.forward(x, pos_edge_index, neg_edge_index)
    out = jax.block_until_ready(out)

    assert out.shape == (num_nodes, hidden_channels), out.shape
    assert out.dtype == jnp.float32
    assert bool(jnp.all(out >= 0.0))  # ReLU output
    print("KERNEL_OK")
</pallas_src>

<mosaic_0001>
module attributes {stable_mosaic.version = 11 : i64} {
  func.func @_signed_conv_kernel(%arg0: i32, %arg1: i32, %arg2: memref<128x256xi8, #tpu.memory_space<vmem>>, %arg3: memref<128x256xi8, #tpu.memory_space<vmem>>, %arg4: memref<256x128xbf16, #tpu.memory_space<vmem>>, %arg5: memref<128x128xbf16, #tpu.memory_space<vmem>>, %arg6: memref<128x1xf32, #tpu.memory_space<vmem>>, %arg7: memref<128x1xf32, #tpu.memory_space<vmem>>, %arg8: memref<128x256xbf16, #tpu.memory_space<vmem>>, %arg9: memref<128x256xbf16, #tpu.memory_space<vmem>>, %arg10: memref<128x256xbf16, #tpu.memory_space<vmem>>, %arg11: memref<1x256xf32, #tpu.memory_space<vmem>>, %arg12: memref<128x256xbf16, #tpu.memory_space<vmem>>, %arg13: memref<128x128xf32, #tpu.memory_space<vmem>>, %arg14: memref<128x128xf32, #tpu.memory_space<vmem>>) attributes {dimension_semantics = [#tpu.dimension_semantics<parallel>, #tpu.dimension_semantics<arbitrary>], iteration_bounds = array<i64: 2, 1>, scalar_prefetch = 0 : i64, scratch_operands = 2 : i64, tpu.core_type = #tpu.core_type<tc>, window_params = [{transform_indices = @transform_0, window_bounds = array<i64: 128, 256>}, {transform_indices = @transform_1, window_bounds = array<i64: 128, 256>}, {transform_indices = @transform_2, window_bounds = array<i64: 256, 128>}, {transform_indices = @transform_3, window_bounds = array<i64: 128, 128>}, {transform_indices = @transform_4, window_bounds = array<i64: 128, 1>}, {transform_indices = @transform_5, window_bounds = array<i64: 128, 1>}, {pipeline_mode = #tpu.pipeline_mode<synchronous>, transform_indices = @transform_6, window_bounds = array<i64: 128, 256>}, {pipeline_mode = #tpu.pipeline_mode<synchronous>, transform_indices = @transform_7, window_bounds = array<i64: 128, 256>}, {pipeline_mode = #tpu.pipeline_mode<synchronous>, transform_indices = @transform_8, window_bounds = array<i64: 128, 256>}, {pipeline_mode = #tpu.pipeline_mode<synchronous>, transform_indices = @transform_9, window_bounds = array<i64: 1, 256>}, {transform_indices = @transform_10, window_bounds = array<i64: 128, 256>}]} {
    %c0_i32 = arith.constant 0 : i32
    %0 = arith.cmpi eq, %arg1, %c0_i32 : i32
    %1 = arith.extui %0 : i1 to i32
    %c0_i32_0 = arith.constant 0 : i32
    %2 = arith.cmpi ne, %1, %c0_i32_0 : i32
    scf.if %2 {
      %cst_17 = arith.constant 0.000000e+00 : f32
      %19 = vector.broadcast %cst_17 : f32 to vector<128x128xf32>
      %c0_18 = arith.constant 0 : index
      %c0_19 = arith.constant 0 : index
      %20 = vector.load %arg13[%c0_18, %c0_19] : memref<128x128xf32, #tpu.memory_space<vmem>>, vector<128x128xf32>
      tpu.vector_store %arg13[%c0_18, %c0_19], %19 {strides = array<i32>} : memref<128x128xf32, #tpu.memory_space<vmem>>, vector<128x128xf32>,
      %cst_20 = arith.constant 0.000000e+00 : f32
      %21 = vector.broadcast %cst_20 : f32 to vector<128x128xf32>
      %c0_21 = arith.constant 0 : index
      %c0_22 = arith.constant 0 : index
      %22 = vector.load %arg14[%c0_21, %c0_22] : memref<128x128xf32, #tpu.memory_space<vmem>>, vector<128x128xf32>
      tpu.vector_store %arg14[%c0_21, %c0_22], %21 {strides = array<i32>} : memref<128x128xf32, #tpu.memory_space<vmem>>, vector<128x128xf32>,
    } else {
    }
    %c0 = arith.constant 0 : index
    %c0_1 = arith.constant 0 : index
    %3 = vector.load %arg4[%c0, %c0_1] : memref<256x128xbf16, #tpu.memory_space<vmem>>, vector<256x128xbf16>
    %c0_2 = arith.constant 0 : index
    %c0_3 = arith.constant 0 : index
    %4 = vector.load %arg13[%c0_2, %c0_3] : memref<128x128xf32, #tpu.memory_space<vmem>>, vector<128x128xf32>
    %c0_4 = arith.constant 0 : index
    %c0_5 = arith.constant 0 : index
    %5 = vector.load %arg2[%c0_4, %c0_5] : memref<128x256xi8, #tpu.memory_space<vmem>>, vector<128x256xi8>
    %6 = arith.sitofp %5 : vector<128x256xi8> to vector<128x256xbf16>
    %cst = arith.constant dense<0.000000e+00> : vector<128x128xf32>
    %7 = tpu.matmul %6, %3, %cst {dimension_numbers = #tpu.dot_dimension_numbers<[1], [0], [0], [1], [0, 0, 1, 1], [], []>} : vector<128x256xbf16>, vector<256x128xbf16>, vector<128x128xf32> -> vector<128x128xf32>
    %8 = arith.addf %4, %7 : vector<128x128xf32>
    %c0_6 = arith.constant 0 : index
    %c0_7 = arith.constant 0 : index
    %9 = vector.load %arg13[%c0_6, %c0_7] : memref<128x128xf32, #tpu.memory_space<vmem>>, vector<128x128xf32>
    tpu.vector_store %arg13[%c0_6, %c0_7], %8 {strides = array<i32>} : memref<128x128xf32, #tpu.memory_space<vmem>>, vector<128x128xf32>,
    %c0_8 = arith.constant 0 : index
    %c0_9 = arith.constant 0 : index
    %10 = vector.load %arg14[%c0_8, %c0_9] : memref<128x128xf32, #tpu.memory_space<vmem>>, vector<128x128xf32>
    %c0_10 = arith.constant 0 : index
    %c0_11 = arith.constant 0 : index
    %11 = vector.load %arg3[%c0_10, %c0_11] : memref<128x256xi8, #tpu.memory_space<vmem>>, vector<128x256xi8>
    %12 = arith.sitofp %11 : vector<128x256xi8> to vector<128x256xbf16>
    %cst_12 = arith.constant dense<0.000000e+00> : vector<128x128xf32>
    %13 = tpu.matmul %12, %3, %cst_12 {dimension_numbers = #tpu.dot_dimension_numbers<[1], [0], [0], [1], [0, 0, 1, 1], [], []>} : vector<128x256xbf16>, vector<256x128xbf16>, vector<128x128xf32> -> vector<128x128xf32>
    %14 = arith.addf %10, %13 : vector<128x128xf32>
    %c0_13 = arith.constant 0 : index
    %c0_14 = arith.constant 0 : index
    %15 = vector.load %arg14[%c0_13, %c0_14] : memref<128x128xf32, #tpu.memory_space<vmem>>, vector<128x128xf32>
    tpu.vector_store %arg14[%c0_13, %c0_14], %14 {strides = array<i32>} : memref<128x128xf32, #tpu.memory_space<vmem>>, vector<128x128xf32>,
    %c0_i32_15 = arith.constant 0 : i32
    %16 = arith.cmpi eq, %arg1, %c0_i32_15 : i32
    %17 = arith.extui %16 : i1 to i32
    %c0_i32_16 = arith.constant 0 : i32
    %18 = arith.cmpi ne, %17, %c0_i32_16 : i32
    scf.if %18 {
      %c0_17 = arith.constant 0 : index
      %c0_18 = arith.constant 0 : index
      %19 = vector.load %arg13[%c0_17, %c0_18] : memref<128x128xf32, #tpu.memory_space<vmem>>, vector<128x128xf32>
      %c0_19 = arith.constant 0 : index
      %c0_20 = arith.constant 0 : index
      %20 = vector.load %arg6[%c0_19, %c0_20] : memref<128x1xf32, #tpu.memory_space<vmem>>, vector<128x1xf32>
      %21 = vector.broadcast %20 : vector<128x1xf32> to vector<128x128xf32>
      %22 = arith.mulf %19, %21 : vector<128x128xf32>
      %23 = arith.truncf %22 : vector<128x128xf32> to vector<128x128xbf16>
      %c0_21 = arith.constant 0 : index
      %c0_22 = arith.constant 0 : index
      %24 = vector.load %arg14[%c0_21, %c0_22] : memref<128x128xf32, #tpu.memory_space<vmem>>, vector<128x128xf32>
      %c0_23 = arith.constant 0 : index
      %c0_24 = arith.constant 0 : index
      %25 = vector.load %arg7[%c0_23, %c0_24] : memref<128x1xf32, #tpu.memory_space<vmem>>, vector<128x1xf32>
      %26 = vector.broadcast %25 : vector<128x1xf32> to vector<128x128xf32>
      %27 = arith.mulf %24, %26 : vector<128x128xf32>
      %28 = arith.truncf %27 : vector<128x128xf32> to vector<128x128xbf16>
      %c0_25 = arith.constant 0 : index
      %c0_26 = arith.constant 0 : index
      %29 = vector.load %arg8[%c0_25, %c0_26] : memref<128x256xbf16, #tpu.memory_space<vmem>>, vector<128x256xbf16>
      %cst_27 = arith.constant dense<0.000000e+00> : vector<128x256xf32>
      %30 = tpu.matmul %23, %29, %cst_27 {dimension_numbers = #tpu.dot_dimension_numbers<[1], [0], [0], [1], [0, 0, 1, 1], [], []>} : vector<128x128xbf16>, vector<128x256xbf16>, vector<128x256xf32> -> vector<128x256xf32>
      %c0_28 = arith.constant 0 : index
      %c0_29 = arith.constant 0 : index
      %31 = vector.load %arg9[%c0_28, %c0_29] : memref<128x256xbf16, #tpu.memory_space<vmem>>, vector<128x256xbf16>
      %cst_30 = arith.constant dense<0.000000e+00> : vector<128x256xf32>
      %32 = tpu.matmul %28, %31, %cst_30 {dimension_numbers = #tpu.dot_dimension_numbers<[1], [0], [0], [1], [0, 0, 1, 1], [], []>} : vector<128x128xbf16>, vector<128x256xbf16>, vector<128x256xf32> -> vector<128x256xf32>
      %33 = arith.addf %30, %32 : vector<128x256xf32>
      %c0_31 = arith.constant 0 : index
      %c0_32 = arith.constant 0 : index
      %34 = vector.load %arg5[%c0_31, %c0_32] : memref<128x128xbf16, #tpu.memory_space<vmem>>, vector<128x128xbf16>
      %c0_33 = arith.constant 0 : index
      %c0_34 = arith.constant 0 : index
      %35 = vector.load %arg10[%c0_33, %c0_34] : memref<128x256xbf16, #tpu.memory_space<vmem>>, vector<128x256xbf16>
      %cst_35 = arith.constant dense<0.000000e+00> : vector<128x256xf32>
      %36 = tpu.matmul %34, %35, %cst_35 {dimension_numbers = #tpu.dot_dimension_numbers<[1], [0], [0], [1], [0, 0, 1, 1], [], []>} : vector<128x128xbf16>, vector<128x256xbf16>, vector<128x256xf32> -> vector<128x256xf32>
      %37 = arith.addf %33, %36 : vector<128x256xf32>
      %c0_36 = arith.constant 0 : index
      %c0_37 = arith.constant 0 : index
      %38 = vector.load %arg11[%c0_36, %c0_37] : memref<1x256xf32, #tpu.memory_space<vmem>>, vector<1x256xf32>
      %39 = vector.broadcast %38 : vector<1x256xf32> to vector<128x256xf32>
      %40 = arith.addf %37, %39 : vector<128x256xf32>
      %cst_38 = arith.constant 0.000000e+00 : f32
      %41 = vector.broadcast %cst_38 : f32 to vector<128x256xf32>
      %42 = arith.maximumf %40, %41 : vector<128x256xf32>
      %43 = arith.truncf %42 : vector<128x256xf32> to vector<128x256xbf16>
      %c0_39 = arith.constant 0 : index
      %c0_40 = arith.constant 0 : index
      %44 = vector.load %arg12[%c0_39, %c0_40] : memref<128x256xbf16, #tpu.memory_space<vmem>>, vector<128x256xbf16>
      tpu.vector_store %arg12[%c0_39, %c0_40], %43 {strides = array<i32>} : memref<128x256xbf16, #tpu.memory_space<vmem>>, vector<128x256xbf16>,
    } else {
    }
    return
  }
  func.func @transform_0(%arg0: i32, %arg1: i32) -> (i32, i32) {
    %c0_i32 = arith.constant 0 : i32
    return %arg0, %arg1 : i32, i32
  }
  func.func @transform_1(%arg0: i32, %arg1: i32) -> (i32, i32) {
    %c0_i32 = arith.constant 0 : i32
    return %arg0, %arg1 : i32, i32
  }
  func.func @transform_2(%arg0: i32, %arg1: i32) -> (i32, i32) {
    %c0_i32 = arith.constant 0 : i32
    %c0_i32_0 = arith.constant 0 : i32
    return %arg1, %c0_i32 : i32, i32
  }
  func.func @transform_3(%arg0: i32, %arg1: i32) -> (i32, i32) {
    %c0_i32 = arith.constant 0 : i32
    %c0_i32_0 = arith.constant 0 : i32
    return %arg0, %c0_i32 : i32, i32
  }
  func.func @transform_4(%arg0: i32, %arg1: i32) -> (i32, i32) {
    %c0_i32 = arith.constant 0 : i32
    %c0_i32_0 = arith.constant 0 : i32
    return %arg0, %c0_i32 : i32, i32
  }
  func.func @transform_5(%arg0: i32, %arg1: i32) -> (i32, i32) {
    %c0_i32 = arith.constant 0 : i32
    %c0_i32_0 = arith.constant 0 : i32
    return %arg0, %c0_i32 : i32, i32
  }
  func.func @transform_6(%arg0: i32, %arg1: i32) -> (i32, i32) {
    %c0_i32 = arith.constant 0 : i32
    %c0_i32_0 = arith.constant 0 : i32
    %c0_i32_1 = arith.constant 0 : i32
    return %c0_i32, %c0_i32_0 : i32, i32
  }
  func.func @transform_7(%arg0: i32, %arg1: i32) -> (i32, i32) {
    %c0_i32 = arith.constant 0 : i32
    %c0_i32_0 = arith.constant 0 : i32
    %c0_i32_1 = arith.constant 0 : i32
    return %c0_i32, %c0_i32_0 : i32, i32
  }
  func.func @transform_8(%arg0: i32, %arg1: i32) -> (i32, i32) {
    %c0_i32 = arith.constant 0 : i32
    %c0_i32_0 = arith.constant 0 : i32
    %c0_i32_1 = arith.constant 0 : i32
    return %c0_i32, %c0_i32_0 : i32, i32
  }
  func.func @transform_9(%arg0: i32, %arg1: i32) -> (i32, i32) {
    %c0_i32 = arith.constant 0 : i32
    %c0_i32_0 = arith.constant 0 : i32
    %c0_i32_1 = arith.constant 0 : i32
    return %c0_i32, %c0_i32_0 : i32, i32
  }
  func.func @transform_10(%arg0: i32, %arg1: i32) -> (i32, i32) {
    %c0_i32 = arith.constant 0 : i32
    %c0_i32_0 = arith.constant 0 : i32
    return %arg0, %c0_i32 : i32, i32
  }
}

</mosaic_0001>

<llo_original>
// kernel: tpu_custom_call.1
$region0: #{tpu_custom_call.1}
  #allocation0 [shape = 'u32[]', space=smem, size = 0x4, offset = 0x4, fixed_abs, tag = 'smem constant byte address 0x4 - core index']
  #allocation1 [shape = 'u32[144,128]{1,0:T(1,128)}', space=vmem, size = 0x12000, scoped, tag = 'internal scratch']
  #allocation2 [shape = 'f32[128,128]{1,0:T(8,128)}', space=vmem, size = 0x10000, scoped, tag = 'scratch operand']
  #allocation3 [shape = 'f32[128,128]{1,0:T(8,128)}', space=vmem, size = 0x10000, scoped, tag = 'scratch operand']
  %s0 = inlined_call_operand.vmem [shape: s8[256,256], index: 0, kind: input, shape index: {}]
  %s1 = inlined_call_operand.vmem [shape: s8[256,256], index: 1, kind: input, shape index: {}]
  %s2 = inlined_call_operand.vmem [shape: bf16[256,128], index: 2, kind: input, shape index: {}]
  %s3 = inlined_call_operand.vmem [shape: bf16[256,128], index: 3, kind: input, shape index: {}]
  %s4 = inlined_call_operand.vmem [shape: f32[256,1], index: 4, kind: input, shape index: {}]
  %s5 = inlined_call_operand.vmem [shape: f32[256,1], index: 5, kind: input, shape index: {}]
  %s6 = inlined_call_operand.hbm [shape: bf16[128,256], index: 6, kind: input, shape index: {}]
  %s7 = inlined_call_operand.hbm [shape: bf16[128,256], index: 7, kind: input, shape index: {}]
  %s8 = inlined_call_operand.hbm [shape: bf16[128,256], index: 8, kind: input, shape index: {}]
  %s9 = inlined_call_operand.vmem [shape: f32[1,256], index: 9, kind: input, shape index: {}]
  %s10 = inlined_call_operand.hbm [shape: bf16[256,256], index: 10, kind: output, shape index: {}]
  %s11 = sld [smem:[#allocation0]]
  $region93: #{tpu_custom_call.1} parent=0
    _
  %s13 = ssub.s32 1, %s11
  %s14 = scalar_select 0, %s13, %s11
  $region1: #{tpu_custom_call.1} parent=0
    #allocation4 [shape = 'u8[65536]{0}', space=vmem, size = 0x10000, scoped, tag = 'input window, operand 6, single buffered']
    #allocation5 [shape = 's32[2]{0}', space=sflag, size = 0x8, scoped, tag = 'scoped memory for tpu_custom_call.1']
    #allocation6 [shape = 's32[2]{0}', space=sflag, size = 0x8, scoped, tag = 'scoped memory for tpu_custom_call.1']
    #allocation7 [shape = 'u8[65536]{0}', space=vmem, size = 0x10000, scoped, tag = 'input window, operand 7, single buffered']
    #allocation8 [shape = 's32[1]{0}', space=sflag, size = 0x4, scoped, tag = 'scoped memory for tpu_custom_call.1']
    #allocation9 [shape = 'u8[65536]{0}', space=vmem, size = 0x10000, scoped, tag = 'input window, operand 8, single buffered']
    #allocation10 [shape = 'u8[131072]{0}', space=vmem, size = 0x20000, scoped, tag = 'output window, operand 0']
    %15 = vsyncpa [#allocation5], 0
    %16 = vsyncpa [#allocation8], 0
    %17 = vsyncpa [#allocation6], 0
    %s18 = scalar_lea.sflag [#allocation6], 1
    %19 = vsyncpa %s18, 0
    loop: start=0, step=1, limit=4
    $region2: #{tpu_custom_call.1} parent=1 // loop_pre_header
      _
    $region3: #{tpu_custom_call.1} parent=1 // loop_header
      %s21 = sphi 0, %s25
      %p22 = scmp.ge.s32.totalorder %s21, 4
      %s28 = sphi 0, %s40
      %s29 = sphi 0, %s36
      %s30 = sphi 0, %s28
      %s31 = sphi 0, %s29
      %s32 = sphi 0, %s30
      %s33 = sphi 0, %s31
      %s45 = sphi 0, %s47
      %s48 = sphi 0, %s45
      %s49 = sphi 0, %s48
      %s65 = sphi 0, %s49
      %s73 = sphi 0, %s75
      %s76 = sphi 0, %s73
      %s77 = sphi 0, %s76
      %s93 = sphi 0, %s77
      %s99 = sphi 0, %s101
      %s102 = sphi 0, %s99
      %s103 = sphi 0, %s102
      %s119 = sphi 0, %s103
      %s125 = sphi 0, %s127
      %s128 = sphi 0, %s125
      %s129 = sphi 0, %s128
      %s145 = sphi 0, %s129
      %s151 = sphi 0, %s153
      %s154 = sphi 0, %s151
      %s155 = sphi 0, %s154
      %s171 = sphi 0, %s155
      %s177 = sphi 0, %s179
      %s180 = sphi 0, %s177
      %s181 = sphi 0, %s180
      %s197 = sphi 0, %s181
      %s201 = sphi 0, %s201
      %s203 = sphi 0, %s201
      %s204 = sphi 0, %s203
      %s218 = sphi 0, %s204
      %s222 = sphi 0, %s222
      %s224 = sphi 0, %s222
      %s225 = sphi 0, %s224
      %s239 = sphi 0, %s225
      %s243 = sphi 0, %s243
      %s245 = sphi 0, %s243
      %s246 = sphi 0, %s245
      %s260 = sphi 0, %s246
      %s264 = sphi 0, %s264
      %s266 = sphi 0, %s264
      %s267 = sphi 0, %s266
      %s281 = sphi 0, %s267
      %s287 = sphi 0, %s289
      %s290 = sphi 0, %s287
      %s291 = sphi 0, %s290
      %s307 = sphi 0, %s291
    $region4: #{tpu_custom_call.1} parent=1 // loop_header_branch
      %24 = sbr.rel (%p22) target = $region8
    $region5: #{tpu_custom_call.1} parent=1 // loop_body
      %s26 = ssub.s32 %s21, 1
      %s27 = ssub.s32 %s21, 2
      %s34 = sadd.s32 1, %s29
      %p35 = scmp.ge.s32.totalorder %s34, 1
      %s36 = scalar_select %p35, 0, %s34
      %s37 = sadd.s32 1, %s28
      %s38 = scalar_select %p35, %s37, %s28
      %p39 = scmp.ge.s32.totalorder %s38, 2
      %s40 = scalar_select %p39, 0, %s38
      %s41 = ssub.s32 %s28, %s40
      %s42 = ssub.s32 %s29, %s36
      %s43 = sor.u32 %s41, %s42
      %p44 = scmp.eq.s32.totalorder %s43, 0
      %s46 = sadd.s32 %s45, 1
      %s47 = scalar_select %p44, %s45, %s46
      %p50 = pneg %p44
      %p51 = scmp.eq.s32.totalorder %s21, 1
      %p52 = por %p50, %p51
      %p53 = scmp.ne.s32.totalorder %s45, %s48
      %p54 = scmp.eq.s32.totalorder %s21, 0
      %p55 = por %p53, %p54
      %p56 = scmp.ne.s32.totalorder %s45, %s48
      %p57 = scmp.eq.s32.totalorder %s26, 1
      %p58 = por %p56, %p57
      %p59 = scmp.ne.s32.totalorder %s48, %s49
      %p60 = scmp.eq.s32.totalorder %s26, 0
      %p61 = por %p59, %p60
      %p62 = scmp.ne.s32.totalorder %s48, %s49
      %p63 = scmp.eq.s32.totalorder %s27, 1
      %p64 = por %p62, %p63
      %p66 = scmp.ne.s32.totalorder %s49, %s65
      %p67 = scmp.eq.s32.totalorder %s27, 0
      %p68 = por %p66, %p67
      %s69 = ssub.s32 %s28, %s40
      %s70 = ssub.s32 %s29, %s36
      %s71 = sor.u32 %s69, %s70
      %p72 = scmp.eq.s32.totalorder %s71, 0
      %s74 = sadd.s32 %s73, 1
      %s75 = scalar_select %p72, %s73, %s74
      %p78 = pneg %p72
      %p79 = scmp.eq.s32.totalorder %s21, 1
      %p80 = por %p78, %p79
      %p81 = scmp.ne.s32.totalorder %s73, %s76
      %p82 = scmp.eq.s32.totalorder %s21, 0
      %p83 = por %p81, %p82
      %p84 = scmp.ne.s32.totalorder %s73, %s76
      %p85 = scmp.eq.s32.totalorder %s26, 1
      %p86 = por %p84, %p85
      %p87 = scmp.ne.s32.totalorder %s76, %s77
      %p88 = scmp.eq.s32.totalorder %s26, 0
      %p89 = por %p87, %p88
      %p90 = scmp.ne.s32.totalorder %s76, %s77
      %p91 = scmp.eq.s32.totalorder %s27, 1
      %p92 = por %p90, %p91
      %p94 = scmp.ne.s32.totalorder %s77, %s93
      %p95 = scmp.eq.s32.totalorder %s27, 0
      %p96 = por %p94, %p95
      %s97 = ssub.s32 %s29, %s36
      %p98 = scmp.eq.s32.totalorder %s97, 0
      %s100 = sadd.s32 %s99, 1
      %s101 = scalar_select %p98, %s99, %s100
      %p104 = pneg %p98
      %p105 = scmp.eq.s32.totalorder %s21, 1
      %p106 = por %p104, %p105
      %p107 = scmp.ne.s32.totalorder %s99, %s102
      %p108 = scmp.eq.s32.totalorder %s21, 0
      %p109 = por %p107, %p108
      %p110 = scmp.ne.s32.totalorder %s99, %s102
      %p111 = scmp.eq.s32.totalorder %s26, 1
      %p112 = por %p110, %p111
      %p113 = scmp.ne.s32.totalorder %s102, %s103
      %p114 = scmp.eq.s32.totalorder %s26, 0
      %p115 = por %p113, %p114
      %p116 = scmp.ne.s32.totalorder %s102, %s103
      %p117 = scmp.eq.s32.totalorder %s27, 1
      %p118 = por %p116, %p117
      %p120 = scmp.ne.s32.totalorder %s103, %s119
      %p121 = scmp.eq.s32.totalorder %s27, 0
      %p122 = por %p120, %p121
      %s123 = ssub.s32 %s28, %s40
      %p124 = scmp.eq.s32.totalorder %s123, 0
      %s126 = sadd.s32 %s125, 1
      %s127 = scalar_select %p124, %s125, %s126
      %p130 = pneg %p124
      %p131 = scmp.eq.s32.totalorder %s21, 1
      %p132 = por %p130, %p131
      %p133 = scmp.ne.s32.totalorder %s125, %s128
      %p134 = scmp.eq.s32.totalorder %s21, 0
      %p135 = por %p133, %p134
      %p136 = scmp.ne.s32.totalorder %s125, %s128
      %p137 = scmp.eq.s32.totalorder %s26, 1
      %p138 = por %p136, %p137
      %p139 = scmp.ne.s32.totalorder %s128, %s129
      %p140 = scmp.eq.s32.totalorder %s26, 0
      %p141 = por %p139, %p140
      %p142 = scmp.ne.s32.totalorder %s128, %s129
      %p143 = scmp.eq.s32.totalorder %s27, 1
      %p144 = por %p142, %p143
      %p146 = scmp.ne.s32.totalorder %s129, %s145
      %p147 = scmp.eq.s32.totalorder %s27, 0
      %p148 = por %p146, %p147
      %s149 = ssub.s32 %s28, %s40
      %p150 = scmp.eq.s32.totalorder %s149, 0
      %s152 = sadd.s32 %s151, 1
      %s153 = scalar_select %p150, %s151, %s152
      %p156 = pneg %p150
      %p157 = scmp.eq.s32.totalorder %s21, 1
      %p158 = por %p156, %p157
      %p159 = scmp.ne.s32.totalorder %s151, %s154
      %p160 = scmp.eq.s32.totalorder %s21, 0
      %p161 = por %p159, %p160
      %p162 = scmp.ne.s32.totalorder %s151, %s154
      %p163 = scmp.eq.s32.totalorder %s26, 1
      %p164 = por %p162, %p163
      %p165 = scmp.ne.s32.totalorder %s154, %s155
      %p166 = scmp.eq.s32.totalorder %s26, 0
      %p167 = por %p165, %p166
      %p168 = scmp.ne.s32.totalorder %s154, %s155
      %p169 = scmp.eq.s32.totalorder %s27, 1
      %p170 = por %p168, %p169
      %p172 = scmp.ne.s32.totalorder %s155, %s171
      %p173 = scmp.eq.s32.totalorder %s27, 0
      %p174 = por %p172, %p173
      %s175 = ssub.s32 %s28, %s40
      %p176 = scmp.eq.s32.totalorder %s175, 0
      %s178 = sadd.s32 %s177, 1
      %s179 = scalar_select %p176, %s177, %s178
      %p182 = pneg %p176
      %p183 = scmp.eq.s32.totalorder %s21, 1
      %p184 = por %p182, %p183
      %p185 = scmp.ne.s32.totalorder %s177, %s180
      %p186 = scmp.eq.s32.totalorder %s21, 0
      %p187 = por %p185, %p186
      %p188 = scmp.ne.s32.totalorder %s177, %s180
      %p189 = scmp.eq.s32.totalorder %s26, 1
      %p190 = por %p188, %p189
      %p191 = scmp.ne.s32.totalorder %s180, %s181
      %p192 = scmp.eq.s32.totalorder %s26, 0
      %p193 = por %p191, %p192
      %p194 = scmp.ne.s32.totalorder %s180, %s181
      %p195 = scmp.eq.s32.totalorder %s27, 1
      %p196 = por %p194, %p195
      %p198 = scmp.ne.s32.totalorder %s181, %s197
      %p199 = scmp.eq.s32.totalorder %s27, 0
      %p200 = por %p198, %p199
      %s202 = sadd.s32 %s201, 1
      %p205 = scmp.eq.s32.totalorder %s21, 1
      %p206 = scmp.ne.s32.totalorder %s201, %s203
      %p207 = scmp.eq.s32.totalorder %s21, 0
      %p208 = por %p206, %p207
      %p209 = scmp.ne.s32.totalorder %s201, %s203
      %p210 = scmp.eq.s32.totalorder %s26, 1
      %p211 = por %p209, %p210
      %p212 = scmp.ne.s32.totalorder %s203, %s204
      %p213 = scmp.eq.s32.totalorder %s26, 0
      %p214 = por %p212, %p213
      %p215 = scmp.ne.s32.totalorder %s203, %s204
      %p216 = scmp.eq.s32.totalorder %s27, 1
      %p217 = por %p215, %p216
      %p219 = scmp.ne.s32.totalorder %s204, %s218
      %p220 = scmp.eq.s32.totalorder %s27, 0
      %p221 = por %p219, %p220
      %s223 = sadd.s32 %s222, 1
      %p226 = scmp.eq.s32.totalorder %s21, 1
      %p227 = scmp.ne.s32.totalorder %s222, %s224
      %p228 = scmp.eq.s32.totalorder %s21, 0
      %p229 = por %p227, %p228
      %p230 = scmp.ne.s32.totalorder %s222, %s224
      %p231 = scmp.eq.s32.totalorder %s26, 1
      %p232 = por %p230, %p231
      %p233 = scmp.ne.s32.totalorder %s224, %s225
      %p234 = scmp.eq.s32.totalorder %s26, 0
      %p235 = por %p233, %p234
      %p236 = scmp.ne.s32.totalorder %s224, %s225
      %p237 = scmp.eq.s32.totalorder %s27, 1
      %p238 = por %p236, %p237
      %p240 = scmp.ne.s32.totalorder %s225, %s239
      %p241 = scmp.eq.s32.totalorder %s27, 0
      %p242 = por %p240, %p241
      %s244 = sadd.s32 %s243, 1
      %p247 = scmp.eq.s32.totalorder %s21, 1
      %p248 = scmp.ne.s32.totalorder %s243, %s245
      %p249 = scmp.eq.s32.totalorder %s21, 0
      %p250 = por %p248, %p249
      %p251 = scmp.ne.s32.totalorder %s243, %s245
      %p252 = scmp.eq.s32.totalorder %s26, 1
      %p253 = por %p251, %p252
      %p254 = scmp.ne.s32.totalorder %s245, %s246
      %p255 = scmp.eq.s32.totalorder %s26, 0
      %p256 = por %p254, %p255
      %p257 = scmp.ne.s32.totalorder %s245, %s246
      %p258 = scmp.eq.s32.totalorder %s27, 1
      %p259 = por %p257, %p258
      %p261 = scmp.ne.s32.totalorder %s246, %s260
      %p262 = scmp.eq.s32.totalorder %s27, 0
      %p263 = por %p261, %p262
      %s265 = sadd.s32 %s264, 1
      %p268 = scmp.eq.s32.totalorder %s21, 1
      %p269 = scmp.ne.s32.totalorder %s264, %s266
      %p270 = scmp.eq.s32.totalorder %s21, 0
      %p271 = por %p269, %p270
      %p272 = scmp.ne.s32.totalorder %s264, %s266
      %p273 = scmp.eq.s32.totalorder %s26, 1
      %p274 = por %p272, %p273
      %p275 = scmp.ne.s32.totalorder %s266, %s267
      %p276 = scmp.eq.s32.totalorder %s26, 0
      %p277 = por %p275, %p276
      %p278 = scmp.ne.s32.totalorder %s266, %s267
      %p279 = scmp.eq.s32.totalorder %s27, 1
      %p280 = por %p278, %p279
      %p282 = scmp.ne.s32.totalorder %s267, %s281
      %p283 = scmp.eq.s32.totalorder %s27, 0
      %p284 = por %p282, %p283
      %s285 = ssub.s32 %s28, %s40
      %p286 = scmp.eq.s32.totalorder %s285, 0
      %s288 = sadd.s32 %s287, 1
      %s289 = scalar_select %p286, %s287, %s288
      %p292 = pneg %p286
      %p293 = scmp.eq.s32.totalorder %s21, 1
      %p294 = por %p292, %p293
      %p295 = scmp.ne.s32.totalorder %s287, %s290
      %p296 = scmp.eq.s32.totalorder %s21, 0
      %p297 = por %p295, %p296
      %p298 = scmp.ne.s32.totalorder %s287, %s290
      %p299 = scmp.eq.s32.totalorder %s26, 1
      %p300 = por %p298, %p299
      %p301 = scmp.ne.s32.totalorder %s290, %s291
      %p302 = scmp.eq.s32.totalorder %s26, 0
      %p303 = por %p301, %p302
      %p304 = scmp.ne.s32.totalorder %s290, %s291
      %p305 = scmp.eq.s32.totalorder %s27, 1
      %p306 = por %p304, %p305
      %p308 = scmp.ne.s32.totalorder %s291, %s307
      %p309 = scmp.eq.s32.totalorder %s27, 0
      %p310 = por %p308, %p309
      %p311 = scmp.le.s32.totalorder 1, %s21
      %p312 = scmp.lt.s32.totalorder %s21, 3
      %p313 = pnand %p311, %p312
      %p314 = pneg %p313
      // Predicated region
      $region9: #{tpu_custom_call.1} parent=5 // pred_check
        _
      $region10: #{tpu_custom_call.1} parent=5 // pred_check_branch
        %316 = sbr.rel (%p313) target = $region12
      $region11: #{tpu_custom_call.1} parent=5 // pred_region
        %s317 = ssub.s32 %s21, 1
        // Predicated region
        $region13: #{tpu_custom_call.1} parent=11 // pred_check
          %p318 = pneg %p115
        $region14: #{tpu_custom_call.1} parent=11 // pred_check_branch
          %320 = sbr.rel (%p318) target = $region16
        $region15: #{tpu_custom_call.1} parent=11 // pred_region
          %s321 = smul.u32 32, %s31
          %p322 = scmp.lt.s32.totalorder %s321, 31
          %s323 = scalar_select %p322, %s321, 31
          %s324 = smul.addr %s323, 4
          %s325 = scalar_lea.vmem %s2, %s324
          %s326 = smul.u32 32, %s31
        $region16: #{tpu_custom_call.1} parent=11 // pred_fallthru
          _
        // Predicated region
        $region17: #{tpu_custom_call.1} parent=11 // pred_check
          %p327 = pneg %p214
        $region18: #{tpu_custom_call.1} parent=11 // pred_check_branch
          %329 = sbr.rel (%p327) target = $region20
        $region19: #{tpu_custom_call.1} parent=11 // pred_region
          %s331 = ssub.s32 2048, 2048
          %332 = vsyncadd [#allocation5], %s331
          %s333 = sshll.u32 [#allocation4], 4
          %s334 = int_to_ptr.vmem [resolvable:$true] %s333
          %339 = dma.hbm_to_vmem [thread:$0]  %s6, 2048, %s334, [#allocation5], 128, 128, 8
        $region20: #{tpu_custom_call.1} parent=11 // pred_fallthru
          _
        // Predicated region
        $region21: #{tpu_custom_call.1} parent=11 // pred_check
          %p340 = pneg %p235
        $region22: #{tpu_custom_call.1} parent=11 // pred_check_branch
          %342 = sbr.rel (%p340) target = $region24
        $region23: #{tpu_custom_call.1} parent=11 // pred_region
          %s344 = ssub.s32 2048, 2048
          %345 = vsyncadd [#allocation8], %s344
          %s346 = sshll.u32 [#allocation7], 4
          %s347 = int_to_ptr.vmem [resolvable:$true] %s346
          %352 = dma.hbm_to_vmem [thread:$0]  %s7, 2048, %s347, [#allocation8], 128, 128, 8
        $region24: #{tpu_custom_call.1} parent=11 // pred_fallthru
          _
        // Predicated region
        $region25: #{tpu_custom_call.1} parent=11 // pred_check
          %p353 = pneg %p256
        $region26: #{tpu_custom_call.1} parent=11 // pred_check_branch
          %355 = sbr.rel (%p353) target = $region28
        $region27: #{tpu_custom_call.1} parent=11 // pred_region
          %s357 = ssub.s32 2048, 2048
          %358 = vsyncadd [#allocation8], %s357
          %s359 = sshll.u32 [#allocation9], 4
          %s360 = int_to_ptr.vmem [resolvable:$true] %s359
          %365 = dma.hbm_to_vmem [thread:$0]  %s8, 2048, %s360, [#allocation8], 128, 128, 8
        $region28: #{tpu_custom_call.1} parent=11 // pred_fallthru
          _
        // Predicated region
        $region29: #{tpu_custom_call.1} parent=11 // pred_check
          %p366 = pneg %p277
        $region30: #{tpu_custom_call.1} parent=11 // pred_check_branch
          %368 = sbr.rel (%p366) target = $region32
        $region31: #{tpu_custom_call.1} parent=11 // pred_region
          _
        $region32: #{tpu_custom_call.1} parent=11 // pred_fallthru
          _
      $region12: #{tpu_custom_call.1} parent=5 // pred_fallthru
        _
      %p369 = scmp.lt.s32.totalorder %s21, 2
      // Predicated region
      $region33: #{tpu_custom_call.1} parent=5 // pred_check
        %p370 = pneg %p369
      $region34: #{tpu_custom_call.1} parent=5 // pred_check_branch
        %372 = sbr.rel (%p370) target = $region36
      $region35: #{tpu_custom_call.1} parent=5 // pred_region
        // Predicated region
        $region37: #{tpu_custom_call.1} parent=35 // pred_check
          %p373 = pneg %p55
        $region38: #{tpu_custom_call.1} parent=35 // pred_check_branch
          %375 = sbr.rel (%p373) target = $region40
        $region39: #{tpu_custom_call.1} parent=35 // pred_region
          %s376 = smul.u32 4, %s28
          %s377 = smul.u32 2, %s29
          %p378 = scmp.lt.s32.totalorder %s376, 7
          %s379 = scalar_select %p378, %s376, 7
          %p380 = scmp.lt.s32.totalorder %s377, 1
          %s381 = scalar_select %p380, %s377, 1
          %s382 = smul.addr %s379, 2
          %s383 = sadd.s32 %s381, %s382
          %s384 = smul.addr %s383, 8
          %s385 = scalar_lea.vmem %s0, %s384
          %s386 = smul.u32 4, %s28
          %s387 = smul.u32 2, %s29
        $region40: #{tpu_custom_call.1} parent=35 // pred_fallthru
          _
        // Predicated region
        $region41: #{tpu_custom_call.1} parent=35 // pred_check
          %p388 = pneg %p83
        $region42: #{tpu_custom_call.1} parent=35 // pred_check_branch
          %390 = sbr.rel (%p388) target = $region44
        $region43: #{tpu_custom_call.1} parent=35 // pred_region
          %s391 = smul.u32 4, %s28
          %s392 = smul.u32 2, %s29
          %p393 = scmp.lt.s32.totalorder %s391, 7
          %s394 = scalar_select %p393, %s391, 7
          %p395 = scmp.lt.s32.totalorder %s392, 1
          %s396 = scalar_select %p395, %s392, 1
          %s397 = smul.addr %s394, 2
          %s398 = sadd.s32 %s396, %s397
          %s399 = smul.addr %s398, 8
          %s400 = scalar_lea.vmem %s1, %s399
          %s401 = smul.u32 4, %s28
          %s402 = smul.u32 2, %s29
        $region44: #{tpu_custom_call.1} parent=35 // pred_fallthru
          _
        // Predicated region
        $region45: #{tpu_custom_call.1} parent=35 // pred_check
          %p403 = pneg %p135
        $region46: #{tpu_custom_call.1} parent=35 // pred_check_branch
          %405 = sbr.rel (%p403) target = $region48
        $region47: #{tpu_custom_call.1} parent=35 // pred_region
          %s406 = smul.u32 16, %s28
          %p407 = scmp.lt.s32.totalorder %s406, 31
          %s408 = scalar_select %p407, %s406, 31
          %s409 = smul.addr %s408, 4
          %s410 = scalar_lea.vmem %s3, %s409
          %s411 = smul.u32 16, %s28
        $region48: #{tpu_custom_call.1} parent=35 // pred_fallthru
          _
        // Predicated region
        $region49: #{tpu_custom_call.1} parent=35 // pred_check
          %p412 = pneg %p161
        $region50: #{tpu_custom_call.1} parent=35 // pred_check_branch
          %414 = sbr.rel (%p412) target = $region52
        $region51: #{tpu_custom_call.1} parent=35 // pred_region
          %s415 = smul.u32 16, %s28
          %p416 = scmp.lt.s32.totalorder %s415, 31
          %s417 = scalar_select %p416, %s415, 31
          %s418 = smul.addr %s417, 8
          %s419 = scalar_lea.vmem %s4, %s418
          %s420 = smul.u32 16, %s28
        $region52: #{tpu_custom_call.1} parent=35 // pred_fallthru
          _
        // Predicated region
        $region53: #{tpu_custom_call.1} parent=35 // pred_check
          %p421 = pneg %p187
        $region54: #{tpu_custom_call.1} parent=35 // pred_check_branch
          %423 = sbr.rel (%p421) target = $region56
        $region55: #{tpu_custom_call.1} parent=35 // pred_region
          %s424 = smul.u32 16, %s28
          %p425 = scmp.lt.s32.totalorder %s424, 31
          %s426 = scalar_select %p425, %s424, 31
          %s427 = smul.addr %s426, 8
          %s428 = scalar_lea.vmem %s5, %s427
          %s429 = smul.u32 16, %s28
        $region56: #{tpu_custom_call.1} parent=35 // pred_fallthru
          _
      $region36: #{tpu_custom_call.1} parent=5 // pred_fallthru
        _
      %p430 = scmp.le.s32.totalorder 1, %s21
      %p431 = scmp.lt.s32.totalorder %s21, 3
      %p432 = pnand %p430, %p431
      %p433 = pneg %p432
      // Predicated region
      $region57: #{tpu_custom_call.1} parent=5 // pred_check
        _
      $region58: #{tpu_custom_call.1} parent=5 // pred_check_branch
        %435 = sbr.rel (%p432) target = $region60
      $region59: #{tpu_custom_call.1} parent=5 // pred_region
        %s436 = ssub.s32 %s21, 1
        // Predicated region
        $region61: #{tpu_custom_call.1} parent=59 // pred_check
          %p437 = pneg %p214
        $region62: #{tpu_custom_call.1} parent=59 // pred_check_branch
          %439 = sbr.rel (%p437) target = $region64
        $region63: #{tpu_custom_call.1} parent=59 // pred_region
          %440 = dma.done [#allocation5], 2048
        $region64: #{tpu_custom_call.1} parent=59 // pred_fallthru
          _
        // Predicated region
        $region65: #{tpu_custom_call.1} parent=59 // pred_check
          %p441 = pneg %p235
        $region66: #{tpu_custom_call.1} parent=59 // pred_check_branch
          %443 = sbr.rel (%p441) target = $region68
        $region67: #{tpu_custom_call.1} parent=59 // pred_region
          %444 = dma.done [#allocation8], 2048
        $region68: #{tpu_custom_call.1} parent=59 // pred_fallthru
          _
        // Predicated region
        $region69: #{tpu_custom_call.1} parent=59 // pred_check
          %p445 = pneg %p256
        $region70: #{tpu_custom_call.1} parent=59 // pred_check_branch
          %447 = sbr.rel (%p445) target = $region72
        $region71: #{tpu_custom_call.1} parent=59 // pred_region
          %448 = dma.done [#allocation8], 2048
        $region72: #{tpu_custom_call.1} parent=59 // pred_fallthru
          _
        %s449 = smul.u32 4, %s30
        %s450 = smul.u32 2, %s31
        %p451 = scmp.lt.s32.totalorder %s449, 7
        %s452 = scalar_select %p451, %s449, 7
        %p453 = scmp.lt.s32.totalorder %s450, 1
        %s454 = scalar_select %p453, %s450, 1
        %s455 = smul.addr %s452, 2
        %s456 = sadd.s32 %s454, %s455
        %s457 = smul.addr %s456, 8
        %s458 = scalar_lea.vmem %s0, %s457
        %p459 = pneg %p61
        %p460 = pneg %p58
        %s461 = smul.u32 4, %s30
        %s462 = smul.u32 2, %s31
        %p463 = scmp.lt.s32.totalorder %s461, 7
        %s464 = scalar_select %p463, %s461, 7
        %p465 = scmp.lt.s32.totalorder %s462, 1
        %s466 = scalar_select %p465, %s462, 1
        %s467 = smul.addr %s464, 2
        %s468 = sadd.s32 %s466, %s467
        %s469 = smul.addr %s468, 8
        %s470 = scalar_lea.vmem %s1, %s469
        %p471 = pneg %p89
        %p472 = pneg %p86
        %s473 = smul.u32 32, %s31
        %p474 = scmp.lt.s32.totalorder %s473, 31
        %s475 = scalar_select %p474, %s473, 31
        %s476 = smul.addr %s475, 4
        %s477 = scalar_lea.vmem %s2, %s476
        %p478 = pneg %p115
        %p479 = pneg %p112
        %s480 = smul.u32 16, %s30
        %p481 = scmp.lt.s32.totalorder %s480, 31
        %s482 = scalar_select %p481, %s480, 31
        %s483 = smul.addr %s482, 4
        %s484 = scalar_lea.vmem %s3, %s483
        %p485 = pneg %p141
        %p486 = pneg %p138
        %s487 = smul.u32 16, %s30
        %p488 = scmp.lt.s32.totalorder %s487, 31
        %s489 = scalar_select %p488, %s487, 31
        %s490 = smul.addr %s489, 8
        %s491 = scalar_lea.vmem %s4, %s490
        %p492 = pneg %p167
        %p493 = pneg %p164
        %s494 = smul.u32 16, %s30
        %p495 = scmp.lt.s32.totalorder %s494, 31
        %s496 = scalar_select %p495, %s494, 31
        %s497 = smul.addr %s496, 8
        %s498 = scalar_lea.vmem %s5, %s497
        %p499 = pneg %p193
        %p500 = pneg %p190
        %p501 = pneg %p214
        %p502 = pneg %p211
        %p503 = pneg %p235
        %p504 = pneg %p232
        %p505 = pneg %p256
        %p506 = pneg %p253
        %p507 = pneg %p277
        %p508 = pneg %p274
        %p509 = pneg %p303
        %p510 = pneg %p300
        %s511 = sand.u32 %s290, 1
        %s512 = scalar_lea.sflag [#allocation6], %s511
        %s513 = sand.u32 %s290, 1
        %s514 = smul.addr %s513, 128
        %s515 = scalar_lea.vmem [#allocation10], %s514
        %s516 = smul.u32 4, %s30
        %s517 = smul.u32 2, %s31
        %p518 = scmp.lt.s32.totalorder %s516, 7
        %s519 = scalar_select %p518, %s516, 7
        %p520 = scmp.lt.s32.totalorder %s517, 1
        %s521 = scalar_select %p520, %s517, 1
        %s522 = smul.addr %s519, 2
        %s523 = sadd.s32 %s521, %s522
        %s524 = smul.addr %s523, 8
        %s525 = scalar_lea.vmem %s0, %s524
        %s526 = smul.u32 4, %s30
        %s527 = smul.u32 2, %s31
        %s528 = smul.u32 4, %s30
        %s529 = smul.u32 2, %s31
        %p530 = scmp.lt.s32.totalorder %s528, 7
        %s531 = scalar_select %p530, %s528, 7
        %p532 = scmp.lt.s32.totalorder %s529, 1
        %s533 = scalar_select %p532, %s529, 1
        %s534 = smul.addr %s531, 2
        %s535 = sadd.s32 %s533, %s534
        %s536 = smul.addr %s535, 8
        %s537 = scalar_lea.vmem %s1, %s536
        %s538 = smul.u32 4, %s30
        %s539 = smul.u32 2, %s31
        %s540 = smul.u32 32, %s31
        %p541 = scmp.lt.s32.totalorder %s540, 31
        %s542 = scalar_select %p541, %s540, 31
        %s543 = smul.addr %s542, 4
        %s544 = scalar_lea.vmem %s2, %s543
        %s545 = smul.u32 32, %s31
        %s546 = smul.u32 16, %s30
        %p547 = scmp.lt.s32.totalorder %s546, 31
        %s548 = scalar_select %p547, %s546, 31
        %s549 = smul.addr %s548, 4
        %s550 = scalar_lea.vmem %s3, %s549
        %s551 = smul.u32 16, %s30
        %s552 = smul.u32 16, %s30
        %p553 = scmp.lt.s32.totalorder %s552, 31
        %s554 = scalar_select %p553, %s552, 31
        %s555 = smul.addr %s554, 8
        %s556 = scalar_lea.vmem %s4, %s555
        %s557 = smul.u32 16, %s30
        %s558 = smul.u32 16, %s30
        %p559 = scmp.lt.s32.totalorder %s558, 31
        %s560 = scalar_select %p559, %s558, 31
        %s561 = smul.addr %s560, 8
        %s562 = scalar_lea.vmem %s5, %s561
        %s563 = smul.u32 16, %s30
        %s564 = smul.u32 16, %s30
        %p566 = scmp.eq.s32.totalorder %s31, 0
        // Predicated region
        $region73: #{tpu_custom_call.1} parent=59 // pred_check
          %p567 = pneg %p566
        $region74: #{tpu_custom_call.1} parent=59 // pred_check_branch
          %569 = sbr.rel (%p567) target = $region76
        $region75: #{tpu_custom_call.1} parent=59 // pred_region
          %570 = vst [vmem:[#allocation2] sm:$0xff] 0.0
          %571 = vst [vmem:[#allocation2 + $0x8] sm:$0xff] 0.0
          %572 = vst [vmem:[#allocation2 + $0x10] sm:$0xff] 0.0
          %573 = vst [vmem:[#allocation2 + $0x18] sm:$0xff] 0.0
          %574 = vst [vmem:[#allocation2 + $0x20] sm:$0xff] 0.0
          %575 = vst [vmem:[#allocation2 + $0x28] sm:$0xff] 0.0
          %576 = vst [vmem:[#allocation2 + $0x30] sm:$0xff] 0.0
          %577 = vst [vmem:[#allocation2 + $0x38] sm:$0xff] 0.0
          %578 = vst [vmem:[#allocation2 + $0x40] sm:$0xff] 0.0
          %579 = vst [vmem:[#allocation2 + $0x48] sm:$0xff] 0.0
          %580 = vst [vmem:[#allocation2 + $0x50] sm:$0xff] 0.0
          %581 = vst [vmem:[#allocation2 + $0x58] sm:$0xff] 0.0
          %582 = vst [vmem:[#allocation2 + $0x60] sm:$0xff] 0.0
          %583 = vst [vmem:[#allocation2 + $0x68] sm:$0xff] 0.0
          %584 = vst [vmem:[#allocation2 + $0x70] sm:$0xff] 0.0
          %585 = vst [vmem:[#allocation2 + $0x78] sm:$0xff] 0.0
          %586 = vst [vmem:[#allocation3] sm:$0xff] 0.0
          %587 = vst [vmem:[#allocation3 + $0x8] sm:$0xff] 0.0
          %588 = vst [vmem:[#allocation3 + $0x10] sm:$0xff] 0.0
          %589 = vst [vmem:[#allocation3 + $0x18] sm:$0xff] 0.0
          %590 = vst [vmem:[#allocation3 + $0x20] sm:$0xff] 0.0
          %591 = vst [vmem:[#allocation3 + $0x28] sm:$0xff] 0.0
          %592 = vst [vmem:[#allocation3 + $0x30] sm:$0xff] 0.0
          %593 = vst [vmem:[#allocation3 + $0x38] sm:$0xff] 0.0
          %594 = vst [vmem:[#allocation3 + $0x40] sm:$0xff] 0.0
          %595 = vst [vmem:[#allocation3 + $0x48] sm:$0xff] 0.0
          %596 = vst [vmem:[#allocation3 + $0x50] sm:$0xff] 0.0
          %597 = vst [vmem:[#allocation3 + $0x58] sm:$0xff] 0.0
          %598 = vst [vmem:[#allocation3 + $0x60] sm:$0xff] 0.0
          %599 = vst [vmem:[#allocation3 + $0x68] sm:$0xff] 0.0
          %600 = vst [vmem:[#allocation3 + $0x70] sm:$0xff] 0.0
          %601 = vst [vmem:[#allocation3 + $0x78] sm:$0xff] 0.0
        $region76: #{tpu_custom_call.1} parent=59 // pred_fallthru
          _
        %v602 = vld [vmem:[%s544] sm:$0xf]
        %v603 = vld [vmem:[%s544 + $0x4] sm:$0xf]
        %v604 = vld [vmem:[%s544 + $0x8] sm:$0xf]
        %v605 = vld [vmem:[%s544 + $0xc] sm:$0xf]
        %v606 = vld [vmem:[%s544 + $0x10] sm:$0xf]
        %v607 = vld [vmem:[%s544 + $0x14] sm:$0xf]
        %v608 = vld [vmem:[%s544 + $0x18] sm:$0xf]
        %v609 = vld [vmem:[%s544 + $0x1c] sm:$0xf]
        %v610 = vld [vmem:[%s544 + $0x20] sm:$0xf]
        %v611 = vld [vmem:[%s544 + $0x24] sm:$0xf]
        %v612 = vld [vmem:[%s544 + $0x28] sm:$0xf]
        %v613 = vld [vmem:[%s544 + $0x2c] sm:$0xf]
        %v614 = vld [vmem:[%s544 + $0x30] sm:$0xf]
        %v615 = vld [vmem:[%s544 + $0x34] sm:$0xf]
        %v616 = vld [vmem:[%s544 + $0x38] sm:$0xf]
        %v617 = vld [vmem:[%s544 + $0x3c] sm:$0xf]
        %v618 = vld [vmem:[%s544 + $0x40] sm:$0xf]
        %v619 = vld [vmem:[%s544 + $0x44] sm:$0xf]
        %v620 = vld [vmem:[%s544 + $0x48] sm:$0xf]
        %v621 = vld [vmem:[%s544 + $0x4c] sm:$0xf]
        %v622 = vld [vmem:[%s544 + $0x50] sm:$0xf]
        %v623 = vld [vmem:[%s544 + $0x54] sm:$0xf]
        %v624 = vld [vmem:[%s544 + $0x58] sm:$0xf]
        %v625 = vld [vmem:[%s544 + $0x5c] sm:$0xf]
        %v626 = vld [vmem:[%s544 + $0x60] sm:$0xf]
        %v627 = vld [vmem:[%s544 + $0x64] sm:$0xf]
        %v628 = vld [vmem:[%s544 + $0x68] sm:$0xf]
        %v629 = vld [vmem:[%s544 + $0x6c] sm:$0xf]
        %v630 = vld [vmem:[%s544 + $0x70] sm:$0xf]
        %v631 = vld [vmem:[%s544 + $0x74] sm:$0xf]
        %v632 = vld [vmem:[%s544 + $0x78] sm:$0xf]
        %v633 = vld [vmem:[%s544 + $0x7c] sm:$0xf]
        %v634 = vld [vmem:[#allocation2] sm:$0xff]
        %v635 = vld [vmem:[#allocation2 + $0x8] sm:$0xff]
        %v636 = vld [vmem:[#allocation2 + $0x10] sm:$0xff]
        %v637 = vld [vmem:[#allocation2 + $0x18] sm:$0xff]
        %v638 = vld [vmem:[#allocation2 + $0x20] sm:$0xff]
        %v639 = vld [vmem:[#allocation2 + $0x28] sm:$0xff]
        %v640 = vld [vmem:[#allocation2 + $0x30] sm:$0xff]
        %v641 = vld [vmem:[#allocation2 + $0x38] sm:$0xff]
        %v642 = vld [vmem:[#allocation2 + $0x40] sm:$0xff]
        %v643 = vld [vmem:[#allocation2 + $0x48] sm:$0xff]
        %v644 = vld [vmem:[#allocation2 + $0x50] sm:$0xff]
        %v645 = vld [vmem:[#allocation2 + $0x58] sm:$0xff]
        %v646 = vld [vmem:[#allocation2 + $0x60] sm:$0xff]
        %v647 = vld [vmem:[#allocation2 + $0x68] sm:$0xff]
        %v648 = vld [vmem:[#allocation2 + $0x70] sm:$0xff]
        %v649 = vld [vmem:[#allocation2 + $0x78] sm:$0xff]
        %v650 = vld [vmem:[%s525] sm:$0xff]
        %v651 = vld [vmem:[%s525 + $0x8] sm:$0xff]
        %v652 = vld [vmem:[%s525 + $0x10] sm:$0xff]
        %v653 = vld [vmem:[%s525 + $0x18] sm:$0xff]
        %v654 = vld [vmem:[%s525 + $0x20] sm:$0xff]
        %v655 = vld [vmem:[%s525 + $0x28] sm:$0xff]
        %v656 = vld [vmem:[%s525 + $0x30] sm:$0xff]
        %v657 = vld [vmem:[%s525 + $0x38] sm:$0xff]
        %v658 = vunpack.c.l.s8.bf16 %v650
        %v659 = vunpack.c.l.s8.bf16 %v651
        %v660 = vunpack.c.h.s8.bf16 %v650
        %v661 = vunpack.c.h.s8.bf16 %v651
        %v662 = vunpack.c.l.s8.bf16 %v652
        %v663 = vunpack.c.l.s8.bf16 %v653
        %v664 = vunpack.c.h.s8.bf16 %v652
        %v665 = vunpack.c.h.s8.bf16 %v653
        %v666 = vunpack.c.l.s8.bf16 %v654
        %v667 = vunpack.c.l.s8.bf16 %v655
        %v668 = vunpack.c.h.s8.bf16 %v654
        %v669 = vunpack.c.h.s8.bf16 %v655
        %v670 = vunpack.c.l.s8.bf16 %v656
        %v671 = vunpack.c.l.s8.bf16 %v657
        %v672 = vunpack.c.h.s8.bf16 %v656
        %v673 = vunpack.c.h.s8.bf16 %v657
        %v706 = vunpack.c.l.b16 %v602
        %v707 = vunpack.c.l.b16 %v603
        %v708 = vunpack.c.l.b16 %v604
        %v709 = vunpack.c.l.b16 %v605
        %v710 = vunpack.c.l.b16 %v606
        %v711 = vunpack.c.l.b16 %v607
        %v712 = vunpack.c.l.b16 %v608
        %v713 = vunpack.c.l.b16 %v609
        %v714 = vunpack.c.l.b16 %v610
        %v715 = vunpack.c.l.b16 %v611
        %v716 = vunpack.c.l.b16 %v612
        %v717 = vunpack.c.l.b16 %v613
        %v718 = vunpack.c.l.b16 %v614
        %v719 = vunpack.c.l.b16 %v615
        %v720 = vunpack.c.l.b16 %v616
        %v721 = vunpack.c.l.b16 %v617
        %v722 = vunpack.c.l.b16 %v618
        %v723 = vunpack.c.l.b16 %v619
        %v724 = vunpack.c.l.b16 %v620
        %v725 = vunpack.c.l.b16 %v621
        %v726 = vunpack.c.l.b16 %v622
        %v727 = vunpack.c.l.b16 %v623
        %v728 = vunpack.c.l.b16 %v624
        %v729 = vunpack.c.l.b16 %v625
        %v730 = vunpack.c.l.b16 %v626
        %v731 = vunpack.c.l.b16 %v627
        %v732 = vunpack.c.l.b16 %v628
        %v733 = vunpack.c.l.b16 %v629
        %v734 = vunpack.c.l.b16 %v630
        %v735 = vunpack.c.l.b16 %v631
        %v736 = vunpack.c.l.b16 %v632
        %v737 = vunpack.c.l.b16 %v633
        %v738 = vpack.c.b16 %v707, %v706
        %v739 = vpack.c.b16 %v709, %v708
        %v740 = vpack.c.b16 %v711, %v710
        %v741 = vpack.c.b16 %v713, %v712
        %v742 = vpack.c.b16 %v715, %v714
        %v743 = vpack.c.b16 %v717, %v716
        %v744 = vpack.c.b16 %v719, %v718
        %v745 = vpack.c.b16 %v721, %v720
        %v746 = vpack.c.b16 %v723, %v722
        %v747 = vpack.c.b16 %v725, %v724
        %v748 = vpack.c.b16 %v727, %v726
        %v749 = vpack.c.b16 %v729, %v728
        %v750 = vpack.c.b16 %v731, %v730
        %v751 = vpack.c.b16 %v733, %v732
        %v752 = vpack.c.b16 %v735, %v734
        %v753 = vpack.c.b16 %v737, %v736
        %770 = vmatprep.subr.bf16.mxu0 0
        %771 = vmatpush1.bf16.msra.mxu0 %v738
        %772 = vmatprep.subr.bf16.mxu0 0
        %773 = vmatpush1.bf16.msra.mxu0 %v739
        %774 = vmatprep.subr.bf16.mxu0 0
        %775 = vmatpush1.bf16.msra.mxu0 %v740
        %776 = vmatprep.subr.bf16.mxu0 0
        %777 = vmatpush1.bf16.msra.mxu0 %v741
        %778 = vmatprep.subr.bf16.mxu0 0
        %779 = vmatpush1.bf16.msra.mxu0 %v742
        %780 = vmatprep.subr.bf16.mxu0 0
        %781 = vmatpush1.bf16.msra.mxu0 %v743
        %782 = vmatprep.subr.bf16.mxu0 0
        %783 = vmatpush1.bf16.msra.mxu0 %v744
        %784 = vmatprep.subr.bf16.mxu0 0
        %785 = vmatpush1.bf16.msra.mxu0 %v745
        %786 = vmatprep.subr.bf16.mxu0 0
        %787 = vmatpush1.bf16.msra.mxu0 %v746
        %788 = vmatprep.subr.bf16.mxu0 0
        %789 = vmatpush1.bf16.msra.mxu0 %v747
        %790 = vmatprep.subr.bf16.mxu0 0
        %791 = vmatpush1.bf16.msra.mxu0 %v748
        %792 = vmatprep.subr.bf16.mxu0 0
        %793 = vmatpush1.bf16.msra.mxu0 %v749
        %794 = vmatprep.subr.bf16.mxu0 0
        %795 = vmatpush1.bf16.msra.mxu0 %v750
        %796 = vmatprep.subr.bf16.mxu0 0
        %797 = vmatpush1.bf16.msra.mxu0 %v751
        %798 = vmatprep.subr.bf16.mxu0 0
        %799 = vmatpush1.bf16.msra.mxu0 %v752
        %800 = vmatprep.subr.bf16.mxu0 0
        %801 = vmatpush1.bf16.msra.mxu0 %v753
        %802 = vmatprep.mubr.bf16.mxu0 %v659
        %803 = vmatmul.mubr.bf16.gmra.mrb[0].mxu0 %v658
        %v804 = vpop.f32.mrb[0].mxu0
        %v805 = vadd.f32 0.0, %v804
        %v806 = vpop.f32.mrb[0].mxu0
        %v807 = vpop.f32.mrb[0].mxu0
        %v808 = vadd.f32 0.0, %v807
        %v809 = vpop.f32.mrb[0].mxu0
        %810 = vmatprep.mubr.bf16.mxu0 %v661
        %811 = vmatmul.mubr.bf16.gmra.mrb[0].mxu0 %v660
        %v812 = vpop.f32.mrb[0].mxu0
        %v813 = vadd.f32 0.0, %v812
        %v814 = vpop.f32.mrb[0].mxu0
        %v815 = vpop.f32.mrb[0].mxu0
        %v816 = vadd.f32 0.0, %v815
        %v817 = vpop.f32.mrb[0].mxu0
        %818 = vmatprep.mubr.bf16.mxu0 %v663
        %819 = vmatmul.mubr.bf16.gmra.mrb[0].mxu0 %v662
        %v820 = vpop.f32.mrb[0].mxu0
        %v821 = vadd.f32 0.0, %v820
        %v822 = vpop.f32.mrb[0].mxu0
        %v823 = vpop.f32.mrb[0].mxu0
        %v824 = vadd.f32 0.0, %v823
        %v825 = vpop.f32.mrb[0].mxu0
        %826 = vmatprep.mubr.bf16.mxu0 %v665
        %827 = vmatmul.mubr.bf16.gmra.mrb[0].mxu0 %v664
        %v828 = vpop.f32.mrb[0].mxu0
        %v829 = vadd.f32 0.0, %v828
        %v830 = vpop.f32.mrb[0].mxu0
        %v831 = vpop.f32.mrb[0].mxu0
        %v832 = vadd.f32 0.0, %v831
        %v833 = vpop.f32.mrb[0].mxu0
        %834 = vmatprep.mubr.bf16.mxu0 %v667
        %835 = vmatmul.mubr.bf16.gmra.mrb[0].mxu0 %v666
        %v836 = vpop.f32.mrb[0].mxu0
        %v837 = vadd.f32 0.0, %v836
        %v838 = vpop.f32.mrb[0].mxu0
        %v839 = vpop.f32.mrb[0].mxu0
        %v840 = vadd.f32 0.0, %v839
        %v841 = vpop.f32.mrb[0].mxu0
        %842 = vmatprep.mubr.bf16.mxu0 %v669
        %843 = vmatmul.mubr.bf16.gmra.mrb[0].mxu0 %v668
        %v844 = vpop.f32.mrb[0].mxu0
        %v845 = vadd.f32 0.0, %v844
        %v846 = vpop.f32.mrb[0].mxu0
        %v847 = vpop.f32.mrb[0].mxu0
        %v848 = vadd.f32 0.0, %v847
        %v849 = vpop.f32.mrb[0].mxu0
        %850 = vmatprep.mubr.bf16.mxu0 %v671
        %851 = vmatmul.mubr.bf16.gmra.mrb[0].mxu0 %v670
        %v852 = vpop.f32.mrb[0].mxu0
        %v853 = vadd.f32 0.0, %v852
        %v854 = vpop.f32.mrb[0].mxu0
        %v855 = vpop.f32.mrb[0].mxu0
        %v856 = vadd.f32 0.0, %v855
        %v857 = vpop.f32.mrb[0].mxu0
        %858 = vmatprep.mubr.bf16.mxu0 %v673
        %859 = vmatmul.mubr.bf16.gmra.mrb[0].mxu0 %v672
        %v860 = vpop.f32.mrb[0].mxu0
        %v861 = vadd.f32 0.0, %v860
        %v862 = vpop.f32.mrb[0].mxu0
        %v863 = vpop.f32.mrb[0].mxu0
        %v864 = vadd.f32 0.0, %v863
        %v865 = vpop.f32.mrb[0].mxu0
        %866 = vdwg.mxu0
        %v867 = vadd.f32 %v634, %v805
        %v868 = vadd.f32 %v635, %v808
        %v869 = vadd.f32 %v636, %v813
        %v870 = vadd.f32 %v637, %v816
        %v871 = vadd.f32 %v638, %v821
        %v872 = vadd.f32 %v639, %v824
        %v873 = vadd.f32 %v640, %v829
        %v874 = vadd.f32 %v641, %v832
        %v875 = vadd.f32 %v642, %v837
        %v876 = vadd.f32 %v643, %v840
        %v877 = vadd.f32 %v644, %v845
        %v878 = vadd.f32 %v645, %v848
        %v879 = vadd.f32 %v646, %v853
        %v880 = vadd.f32 %v647, %v856
        %v881 = vadd.f32 %v648, %v861
        %v882 = vadd.f32 %v649, %v864
        %883 = vst [vmem:[#allocation2] sm:$0xff] %v867
        %884 = vst [vmem:[#allocation2 + $0x8] sm:$0xff] %v868
        %885 = vst [vmem:[#allocation2 + $0x10] sm:$0xff] %v869
        %886 = vst [vmem:[#allocation2 + $0x18] sm:$0xff] %v870
        %887 = vst [vmem:[#allocation2 + $0x20] sm:$0xff] %v871
        %888 = vst [vmem:[#allocation2 + $0x28] sm:$0xff] %v872
        %889 = vst [vmem:[#allocation2 + $0x30] sm:$0xff] %v873
        %890 = vst [vmem:[#allocation2 + $0x38] sm:$0xff] %v874
        %891 = vst [vmem:[#allocation2 + $0x40] sm:$0xff] %v875
        %892 = vst [vmem:[#allocation2 + $0x48] sm:$0xff] %v876
        %893 = vst [vmem:[#allocation2 + $0x50] sm:$0xff] %v877
        %894 = vst [vmem:[#allocation2 + $0x58] sm:$0xff] %v878
        %895 = vst [vmem:[#allocation2 + $0x60] sm:$0xff] %v879
        %896 = vst [vmem:[#allocation2 + $0x68] sm:$0xff] %v880
        %897 = vst [vmem:[#allocation2 + $0x70] sm:$0xff] %v881
        %898 = vst [vmem:[#allocation2 + $0x78] sm:$0xff] %v882
        %v899 = vld [vmem:[#allocation3] sm:$0xff]
        %v900 = vld [vmem:[#allocation3 + $0x8] sm:$0xff]
        %v901 = vld [vmem:[#allocation3 + $0x10] sm:$0xff]
        %v902 = vld [vmem:[#allocation3 + $0x18] sm:$0xff]
        %v903 = vld [vmem:[#allocation3 + $0x20] sm:$0xff]
        %v904 = vld [vmem:[#allocation3 + $0x28] sm:$0xff]
        %v905 = vld [vmem:[#allocation3 + $0x30] sm:$0xff]
        %v906 = vld [vmem:[#allocation3 + $0x38] sm:$0xff]
        %v907 = vld [vmem:[#allocation3 + $0x40] sm:$0xff]
        %v908 = vld [vmem:[#allocation3 + $0x48] sm:$0xff]
        %v909 = vld [vmem:[#allocation3 + $0x50] sm:$0xff]
        %v910 = vld [vmem:[#allocation3 + $0x58] sm:$0xff]
        %v911 = vld [vmem:[#allocation3 + $0x60] sm:$0xff]
        %v912 = vld [vmem:[#allocation3 + $0x68] sm:$0xff]
        %v913 = vld [vmem:[#allocation3 + $0x70] sm:$0xff]
        %v914 = vld [vmem:[#allocation3 + $0x78] sm:$0xff]
        %v915 = vld [vmem:[%s537] sm:$0xff]
        %v916 = vld [vmem:[%s537 + $0x8] sm:$0xff]
        %v917 = vld [vmem:[%s537 + $0x10] sm:$0xff]
        %v918 = vld [vmem:[%s537 + $0x18] sm:$0xff]
        %v919 = vld [vmem:[%s537 + $0x20] sm:$0xff]
        %v920 = vld [vmem:[%s537 + $0x28] sm:$0xff]
        %v921 = vld [vmem:[%s537 + $0x30] sm:$0xff]
        %v922 = vld [vmem:[%s537 + $0x38] sm:$0xff]
        %v923 = vunpack.c.l.s8.bf16 %v915
        %v924 = vunpack.c.l.s8.bf16 %v916
        %v925 = vunpack.c.h.s8.bf16 %v915
        %v926 = vunpack.c.h.s8.bf16 %v916
        %v927 = vunpack.c.l.s8.bf16 %v917
        %v928 = vunpack.c.l.s8.bf16 %v918
        %v929 = vunpack.c.h.s8.bf16 %v917
        %v930 = vunpack.c.h.s8.bf16 %v918
        %v931 = vunpack.c.l.s8.bf16 %v919
        %v932 = vunpack.c.l.s8.bf16 %v920
        %v933 = vunpack.c.h.s8.bf16 %v919
        %v934 = vunpack.c.h.s8.bf16 %v920
        %v935 = vunpack.c.l.s8.bf16 %v921
        %v936 = vunpack.c.l.s8.bf16 %v922
        %v937 = vunpack.c.h.s8.bf16 %v921
        %v938 = vunpack.c.h.s8.bf16 %v922
        %939 = vmatprep.subr.bf16.mxu0 0
        %940 = vmatpush1.bf16.msra.mxu0 %v738
        %941 = vmatprep.subr.bf16.mxu0 0
        %942 = vmatpush1.bf16.msra.mxu0 %v739
        %943 = vmatprep.subr.bf16.mxu0 0
        %944 = vmatpush1.bf16.msra.mxu0 %v740
        %945 = vmatprep.subr.bf16.mxu0 0
        %946 = vmatpush1.bf16.msra.mxu0 %v741
        %947 = vmatprep.subr.bf16.mxu0 0
        %948 = vmatpush1.bf16.msra.mxu0 %v742
        %949 = vmatprep.subr.bf16.mxu0 0
        %950 = vmatpush1.bf16.msra.mxu0 %v743
        %951 = vmatprep.subr.bf16.mxu0 0
        %952 = vmatpush1.bf16.msra.mxu0 %v744
        %953 = vmatprep.subr.bf16.mxu0 0
        %954 = vmatpush1.bf16.msra.mxu0 %v745
        %955 = vmatprep.subr.bf16.mxu0 0
        %956 = vmatpush1.bf16.msra.mxu0 %v746
        %957 = vmatprep.subr.bf16.mxu0 0
        %958 = vmatpush1.bf16.msra.mxu0 %v747
        %959 = vmatprep.subr.bf16.mxu0 0
        %960 = vmatpush1.bf16.msra.mxu0 %v748
        %961 = vmatprep.subr.bf16.mxu0 0
        %962 = vmatpush1.bf16.msra.mxu0 %v749
        %963 = vmatprep.subr.bf16.mxu0 0
        %964 = vmatpush1.bf16.msra.mxu0 %v750
        %965 = vmatprep.subr.bf16.mxu0 0
        %966 = vmatpush1.bf16.msra.mxu0 %v751
        %967 = vmatprep.subr.bf16.mxu0 0
        %968 = vmatpush1.bf16.msra.mxu0 %v752
        %969 = vmatprep.subr.bf16.mxu0 0
        %970 = vmatpush1.bf16.msra.mxu0 %v753
        %971 = vmatprep.mubr.bf16.mxu0 %v924
        %972 = vmatmul.mubr.bf16.gmra.mrb[0].mxu0 %v923
        %v973 = vpop.f32.mrb[0].mxu0
        %v974 = vadd.f32 0.0, %v973
        %v975 = vpop.f32.mrb[0].mxu0
        %v976 = vpop.f32.mrb[0].mxu0
        %v977 = vadd.f32 0.0, %v976
        %v978 = vpop.f32.mrb[0].mxu0
        %979 = vmatprep.mubr.bf16.mxu0 %v926
        %980 = vmatmul.mubr.bf16.gmra.mrb[0].mxu0 %v925
        %v981 = vpop.f32.mrb[0].mxu0
        %v982 = vadd.f32 0.0, %v981
        %v983 = vpop.f32.mrb[0].mxu0
        %v984 = vpop.f32.mrb[0].mxu0
        %v985 = vadd.f32 0.0, %v984
        %v986 = vpop.f32.mrb[0].mxu0
        %987 = vmatprep.mubr.bf16.mxu0 %v928
        %988 = vmatmul.mubr.bf16.gmra.mrb[0].mxu0 %v927
        %v989 = vpop.f32.mrb[0].mxu0
        %v990 = vadd.f32 0.0, %v989
        %v991 = vpop.f32.mrb[0].mxu0
        %v992 = vpop.f32.mrb[0].mxu0
        %v993 = vadd.f32 0.0, %v992
        %v994 = vpop.f32.mrb[0].mxu0
        %995 = vmatprep.mubr.bf16.mxu0 %v930
        %996 = vmatmul.mubr.bf16.gmra.mrb[0].mxu0 %v929
        %v997 = vpop.f32.mrb[0].mxu0
        %v998 = vadd.f32 0.0, %v997
        %v999 = vpop.f32.mrb[0].mxu0
        %v1000 = vpop.f32.mrb[0].mxu0
        %v1001 = vadd.f32 0.0, %v1000
        %v1002 = vpop.f32.mrb[0].mxu0
        %1003 = vmatprep.mubr.bf16.mxu0 %v932
        %1004 = vmatmul.mubr.bf16.gmra.mrb[0].mxu0 %v931
        %v1005 = vpop.f32.mrb[0].mxu0
        %v1006 = vadd.f32 0.0, %v1005
        %v1007 = vpop.f32.mrb[0].mxu0
        %v1008 = vpop.f32.mrb[0].mxu0
        %v1009 = vadd.f32 0.0, %v1008
        %v1010 = vpop.f32.mrb[0].mxu0
        %1011 = vmatprep.mubr.bf16.mxu0 %v934
        %1012 = vmatmul.mubr.bf16.gmra.mrb[0].mxu0 %v933
        %v1013 = vpop.f32.mrb[0].mxu0
        %v1014 = vadd.f32 0.0, %v1013
        %v1015 = vpop.f32.mrb[0].mxu0
        %v1016 = vpop.f32.mrb[0].mxu0
        %v1017 = vadd.f32 0.0, %v1016
        %v1018 = vpop.f32.mrb[0].mxu0
        %1019 = vmatprep.mubr.bf16.mxu0 %v936
        %1020 = vmatmul.mubr.bf16.gmra.mrb[0].mxu0 %v935
        %v1021 = vpop.f32.mrb[0].mxu0
        %v1022 = vadd.f32 0.0, %v1021
        %v1023 = vpop.f32.mrb[0].mxu0
        %v1024 = vpop.f32.mrb[0].mxu0
        %v1025 = vadd.f32 0.0, %v1024
        %v1026 = vpop.f32.mrb[0].mxu0
        %1027 = vmatprep.mubr.bf16.mxu0 %v938
        %1028 = vmatmul.mubr.bf16.gmra.mrb[0].mxu0 %v937
        %v1029 = vpop.f32.mrb[0].mxu0
        %v1030 = vadd.f32 0.0, %v1029
        %v1031 = vpop.f32.mrb[0].mxu0
        %v1032 = vpop.f32.mrb[0].mxu0
        %v1033 = vadd.f32 0.0, %v1032
        %v1034 = vpop.f32.mrb[0].mxu0
        %1035 = vdwg.mxu0
        %v1036 = vadd.f32 %v899, %v974
        %v1037 = vadd.f32 %v900, %v977
        %v1038 = vadd.f32 %v901, %v982
        %v1039 = vadd.f32 %v902, %v985
        %v1040 = vadd.f32 %v903, %v990
        %v1041 = vadd.f32 %v904, %v993
        %v1042 = vadd.f32 %v905, %v998
        %v1043 = vadd.f32 %v906, %v1001
        %v1044 = vadd.f32 %v907, %v1006
        %v1045 = vadd.f32 %v908, %v1009
        %v1046 = vadd.f32 %v909, %v1014
        %v1047 = vadd.f32 %v910, %v1017
        %v1048 = vadd.f32 %v911, %v1022
        %v1049 = vadd.f32 %v912, %v1025
        %v1050 = vadd.f32 %v913, %v1030
        %v1051 = vadd.f32 %v914, %v1033
        %1052 = vst [vmem:[#allocation3] sm:$0xff] %v1036
        %1053 = vst [vmem:[#allocation3 + $0x8] sm:$0xff] %v1037
        %1054 = vst [vmem:[#allocation3 + $0x10] sm:$0xff] %v1038
        %1055 = vst [vmem:[#allocation3 + $0x18] sm:$0xff] %v1039
        %1056 = vst [vmem:[#allocation3 + $0x20] sm:$0xff] %v1040
        %1057 = vst [vmem:[#allocation3 + $0x28] sm:$0xff] %v1041
        %1058 = vst [vmem:[#allocation3 + $0x30] sm:$0xff] %v1042
        %1059 = vst [vmem:[#allocation3 + $0x38] sm:$0xff] %v1043
        %1060 = vst [vmem:[#allocation3 + $0x40] sm:$0xff] %v1044
        %1061 = vst [vmem:[#allocation3 + $0x48] sm:$0xff] %v1045
        %1062 = vst [vmem:[#allocation3 + $0x50] sm:$0xff] %v1046
        %1063 = vst [vmem:[#allocation3 + $0x58] sm:$0xff] %v1047
        %1064 = vst [vmem:[#allocation3 + $0x60] sm:$0xff] %v1048
        %1065 = vst [vmem:[#allocation3 + $0x68] sm:$0xff] %v1049
        %1066 = vst [vmem:[#allocation3 + $0x70] sm:$0xff] %v1050
        %1067 = vst [vmem:[#allocation3 + $0x78] sm:$0xff] %v1051
        // Predicated region
        $region77: #{tpu_custom_call.1} parent=59 // pred_check
          %p1068 = pneg %p566
        $region78: #{tpu_custom_call.1} parent=59 // pred_check_branch
          %1070 = sbr.rel (%p1068) target = $region80
        $region79: #{tpu_custom_call.1} parent=59 // pred_region
          %v1071 = vld [vmem:[#allocation2] sm:$0xff]
          %v1072 = vld [vmem:[#allocation2 + $0x8] sm:$0xff]
          %v1073 = vld [vmem:[#allocation2 + $0x10] sm:$0xff]
          %v1074 = vld [vmem:[#allocation2 + $0x18] sm:$0xff]
          %v1075 = vld [vmem:[#allocation2 + $0x20] sm:$0xff]
          %v1076 = vld [vmem:[#allocation2 + $0x28] sm:$0xff]
          %v1077 = vld [vmem:[#allocation2 + $0x30] sm:$0xff]
          %v1078 = vld [vmem:[#allocation2 + $0x38] sm:$0xff]
          %v1079 = vld [vmem:[#allocation2 + $0x40] sm:$0xff]
          %v1080 = vld [vmem:[#allocation2 + $0x48] sm:$0xff]
          %v1081 = vld [vmem:[#allocation2 + $0x50] sm:$0xff]
          %v1082 = vld [vmem:[#allocation2 + $0x58] sm:$0xff]
          %v1083 = vld [vmem:[#allocation2 + $0x60] sm:$0xff]
          %v1084 = vld [vmem:[#allocation2 + $0x68] sm:$0xff]
          %v1085 = vld [vmem:[#allocation2 + $0x70] sm:$0xff]
          %v1086 = vld [vmem:[#allocation2 + $0x78] sm:$0xff]
          %v1087 = vld [vmem:[%s556] sm:$0xff]
          %v1088 = vld [vmem:[%s556 + $0x8] sm:$0xff]
          %v1089 = vld [vmem:[%s556 + $0x10] sm:$0xff]
          %v1090 = vld [vmem:[%s556 + $0x18] sm:$0xff]
          %v1091 = vld [vmem:[%s556 + $0x20] sm:$0xff]
          %v1092 = vld [vmem:[%s556 + $0x28] sm:$0xff]
          %v1093 = vld [vmem:[%s556 + $0x30] sm:$0xff]
          %v1094 = vld [vmem:[%s556 + $0x38] sm:$0xff]
          %v1095 = vld [vmem:[%s556 + $0x40] sm:$0xff]
          %v1096 = vld [vmem:[%s556 + $0x48] sm:$0xff]
          %v1097 = vld [vmem:[%s556 + $0x50] sm:$0xff]
          %v1098 = vld [vmem:[%s556 + $0x58] sm:$0xff]
          %v1099 = vld [vmem:[%s556 + $0x60] sm:$0xff]
          %v1100 = vld [vmem:[%s556 + $0x68] sm:$0xff]
          %v1101 = vld [vmem:[%s556 + $0x70] sm:$0xff]
          %v1102 = vld [vmem:[%s556 + $0x78] sm:$0xff]
          %1104 = vset.pattern.permute.xlu0 0
          %1105 = vperm.xlu0 %1104, %v1087
          %v1106 = vpop.permute.xlu0 %1105
          %1109 = vset.pattern.permute.xlu0 0
          %1110 = vperm.xlu0 %1109, %v1088
          %v1111 = vpop.permute.xlu0 %1110
          %1114 = vset.pattern.permute.xlu0 0
          %1115 = vperm.xlu0 %1114, %v1089
          %v1116 = vpop.permute.xlu0 %1115
          %1119 = vset.pattern.permute.xlu0 0
          %1120 = vperm.xlu0 %1119, %v1090
          %v1121 = vpop.permute.xlu0 %1120
          %1124 = vset.pattern.permute.xlu0 0
          %1125 = vperm.xlu0 %1124, %v1091
          %v1126 = vpop.permute.xlu0 %1125
          %1129 = vset.pattern.permute.xlu0 0
          %1130 = vperm.xlu0 %1129, %v1092
          %v1131 = vpop.permute.xlu0 %1130
          %1134 = vset.pattern.permute.xlu0 0
          %1135 = vperm.xlu0 %1134, %v1093
          %v1136 = vpop.permute.xlu0 %1135
          %1139 = vset.pattern.permute.xlu0 0
          %1140 = vperm.xlu0 %1139, %v1094
          %v1141 = vpop.permute.xlu0 %1140
          %1144 = vset.pattern.permute.xlu0 0
          %1145 = vperm.xlu0 %1144, %v1095
          %v1146 = vpop.permute.xlu0 %1145
          %1149 = vset.pattern.permute.xlu0 0
          %1150 = vperm.xlu0 %1149, %v1096
          %v1151 = vpop.permute.xlu0 %1150
          %1154 = vset.pattern.permute.xlu0 0
          %1155 = vperm.xlu0 %1154, %v1097
          %v1156 = vpop.permute.xlu0 %1155
          %1159 = vset.pattern.permute.xlu0 0
          %1160 = vperm.xlu0 %1159, %v1098
          %v1161 = vpop.permute.xlu0 %1160
          %1164 = vset.pattern.permute.xlu0 0
          %1165 = vperm.xlu0 %1164, %v1099
          %v1166 = vpop.permute.xlu0 %1165
          %1169 = vset.pattern.permute.xlu0 0
          %1170 = vperm.xlu0 %1169, %v1100
          %v1171 = vpop.permute.xlu0 %1170
          %1174 = vset.pattern.permute.xlu0 0
          %1175 = vperm.xlu0 %1174, %v1101
          %v1176 = vpop.permute.xlu0 %1175
          %1179 = vset.pattern.permute.xlu0 0
          %1180 = vperm.xlu0 %1179, %v1102
          %v1181 = vpop.permute.xlu0 %1180
          %v1183 = vmul.f32 %v1071, %v1106
          %v1184 = vmul.f32 %v1072, %v1111
          %v1185 = vmul.f32 %v1073, %v1116
          %v1186 = vmul.f32 %v1074, %v1121
          %v1187 = vmul.f32 %v1075, %v1126
          %v1188 = vmul.f32 %v1076, %v1131
          %v1189 = vmul.f32 %v1077, %v1136
          %v1190 = vmul.f32 %v1078, %v1141
          %v1191 = vmul.f32 %v1079, %v1146
          %v1192 = vmul.f32 %v1080, %v1151
          %v1193 = vmul.f32 %v1081, %v1156
          %v1194 = vmul.f32 %v1082, %v1161
          %v1195 = vmul.f32 %v1083, %v1166
          %v1196 = vmul.f32 %v1084, %v1171
          %v1197 = vmul.f32 %v1085, %v1176
          %v1198 = vmul.f32 %v1086, %v1181
          %v1199 = vpack.c.bf16 %v1184, %v1183
          %v1200 = vpack.c.bf16 %v1186, %v1185
          %v1201 = vpack.c.bf16 %v1188, %v1187
          %v1202 = vpack.c.bf16 %v1190, %v1189
          %v1203 = vpack.c.bf16 %v1192, %v1191
          %v1204 = vpack.c.bf16 %v1194, %v1193
          %v1205 = vpack.c.bf16 %v1196, %v1195
          %v1206 = vpack.c.bf16 %v1198, %v1197
          %v1207 = vld [vmem:[#allocation3] sm:$0xff]
          %v1208 = vld [vmem:[#allocation3 + $0x8] sm:$0xff]
          %v1209 = vld [vmem:[#allocation3 + $0x10] sm:$0xff]
          %v1210 = vld [vmem:[#allocation3 + $0x18] sm:$0xff]
          %v1211 = vld [vmem:[#allocation3 + $0x20] sm:$0xff]
          %v1212 = vld [vmem:[#allocation3 + $0x28] sm:$0xff]
          %v1213 = vld [vmem:[#allocation3 + $0x30] sm:$0xff]
          %v1214 = vld [vmem:[#allocation3 + $0x38] sm:$0xff]
          %v1215 = vld [vmem:[#allocation3 + $0x40] sm:$0xff]
          %v1216 = vld [vmem:[#allocation3 + $0x48] sm:$0xff]
          %v1217 = vld [vmem:[#allocation3 + $0x50] sm:$0xff]
          %v1218 = vld [vmem:[#allocation3 + $0x58] sm:$0xff]
          %v1219 = vld [vmem:[#allocation3 + $0x60] sm:$0xff]
          %v1220 = vld [vmem:[#allocation3 + $0x68] sm:$0xff]
          %v1221 = vld [vmem:[#allocation3 + $0x70] sm:$0xff]
          %v1222 = vld [vmem:[#allocation3 + $0x78] sm:$0xff]
          %v1223 = vld [vmem:[%s562] sm:$0xff]
          %v1224 = vld [vmem:[%s562 + $0x8] sm:$0xff]
          %v1225 = vld [vmem:[%s562 + $0x10] sm:$0xff]
          %v1226 = vld [vmem:[%s562 + $0x18] sm:$0xff]
          %v1227 = vld [vmem:[%s562 + $0x20] sm:$0xff]
          %v1228 = vld [vmem:[%s562 + $0x28] sm:$0xff]
          %v1229 = vld [vmem:[%s562 + $0x30] sm:$0xff]
          %v1230 = vld [vmem:[%s562 + $0x38] sm:$0xff]
          %v1231 = vld [vmem:[%s562 + $0x40] sm:$0xff]
          %v1232 = vld [vmem:[%s562 + $0x48] sm:$0xff]
          %v1233 = vld [vmem:[%s562 + $0x50] sm:$0xff]
          %v1234 = vld [vmem:[%s562 + $0x58] sm:$0xff]
          %v1235 = vld [vmem:[%s562 + $0x60] sm:$0xff]
          %v1236 = vld [vmem:[%s562 + $0x68] sm:$0xff]
          %v1237 = vld [vmem:[%s562 + $0x70] sm:$0xff]
          %v1238 = vld [vmem:[%s562 + $0x78] sm:$0xff]
          %1240 = vset.pattern.permute.xlu0 0
          %1241 = vperm.xlu0 %1240, %v1223
          %v1242 = vpop.permute.xlu0 %1241
          %1245 = vset.pattern.permute.xlu0 0
          %1246 = vperm.xlu0 %1245, %v1224
          %v1247 = vpop.permute.xlu0 %1246
          %1250 = vset.pattern.permute.xlu0 0
          %1251 = vperm.xlu0 %1250, %v1225
          %v1252 = vpop.permute.xlu0 %1251
          %1255 = vset.pattern.permute.xlu0 0
          %1256 = vperm.xlu0 %1255, %v1226
          %v1257 = vpop.permute.xlu0 %1256
          %1260 = vset.pattern.permute.xlu0 0
          %1261 = vperm.xlu0 %1260, %v1227
          %v1262 = vpop.permute.xlu0 %1261
          %1265 = vset.pattern.permute.xlu0 0
          %1266 = vperm.xlu0 %1265, %v1228
          %v1267 = vpop.permute.xlu0 %1266
          %1270 = vset.pattern.permute.xlu0 0
          %1271 = vperm.xlu0 %1270, %v1229
          %v1272 = vpop.permute.xlu0 %1271
          %1275 = vset.pattern.permute.xlu0 0
          %1276 = vperm.xlu0 %1275, %v1230
          %v1277 = vpop.permute.xlu0 %1276
          %1280 = vset.pattern.permute.xlu0 0
          %1281 = vperm.xlu0 %1280, %v1231
          %v1282 = vpop.permute.xlu0 %1281
          %1285 = vset.pattern.permute.xlu0 0
          %1286 = vperm.xlu0 %1285, %v1232
          %v1287 = vpop.permute.xlu0 %1286
          %1290 = vset.pattern.permute.xlu0 0
          %1291 = vperm.xlu0 %1290, %v1233
          %v1292 = vpop.permute.xlu0 %1291
          %1295 = vset.pattern.permute.xlu0 0
          %1296 = vperm.xlu0 %1295, %v1234
          %v1297 = vpop.permute.xlu0 %1296
          %1300 = vset.pattern.permute.xlu0 0
          %1301 = vperm.xlu0 %1300, %v1235
          %v1302 = vpop.permute.xlu0 %1301
          %1305 = vset.pattern.permute.xlu0 0
          %1306 = vperm.xlu0 %1305, %v1236
          %v1307 = vpop.permute.xlu0 %1306
          %1310 = vset.pattern.permute.xlu0 0
          %1311 = vperm.xlu0 %1310, %v1237
          %v1312 = vpop.permute.xlu0 %1311
          %1315 = vset.pattern.permute.xlu0 0
          %1316 = vperm.xlu0 %1315, %v1238
          %v1317 = vpop.permute.xlu0 %1316
          %v1319 = vmul.f32 %v1207, %v1242
          %v1320 = vmul.f32 %v1208, %v1247
          %v1321 = vmul.f32 %v1209, %v1252
          %v1322 = vmul.f32 %v1210, %v1257
          %v1323 = vmul.f32 %v1211, %v1262
          %v1324 = vmul.f32 %v1212, %v1267
          %v1325 = vmul.f32 %v1213, %v1272
          %v1326 = vmul.f32 %v1214, %v1277
          %v1327 = vmul.f32 %v1215, %v1282
          %v1328 = vmul.f32 %v1216, %v1287
          %v1329 = vmul.f32 %v1217, %v1292
          %v1330 = vmul.f32 %v1218, %v1297
          %v1331 = vmul.f32 %v1219, %v1302
          %v1332 = vmul.f32 %v1220, %v1307
          %v1333 = vmul.f32 %v1221, %v1312
          %v1334 = vmul.f32 %v1222, %v1317
          %v1335 = vpack.c.bf16 %v1320, %v1319
          %v1336 = vpack.c.bf16 %v1322, %v1321
          %v1337 = vpack.c.bf16 %v1324, %v1323
          %v1338 = vpack.c.bf16 %v1326, %v1325
          %v1339 = vpack.c.bf16 %v1328, %v1327
          %v1340 = vpack.c.bf16 %v1330, %v1329
          %v1341 = vpack.c.bf16 %v1332, %v1331
          %v1342 = vpack.c.bf16 %v1334, %v1333
          %v1343 = vld [vmem:[#allocation4] sm:$0xff]
          %v1344 = vld [vmem:[#allocation4 + $0x8] sm:$0xff]
          %v1345 = vld [vmem:[#allocation4 + $0x10] sm:$0xff]
          %v1346 = vld [vmem:[#allocation4 + $0x18] sm:$0xff]
          %v1347 = vld [vmem:[#allocation4 + $0x20] sm:$0xff]
          %v1348 = vld [vmem:[#allocation4 + $0x28] sm:$0xff]
          %v1349 = vld [vmem:[#allocation4 + $0x30] sm:$0xff]
          %v1350 = vld [vmem:[#allocation4 + $0x38] sm:$0xff]
          %v1351 = vld [vmem:[#allocation4 + $0x40] sm:$0xff]
          %v1352 = vld [vmem:[#allocation4 + $0x48] sm:$0xff]
          %v1353 = vld [vmem:[#allocation4 + $0x50] sm:$0xff]
          %v1354 = vld [vmem:[#allocation4 + $0x58] sm:$0xff]
          %v1355 = vld [vmem:[#allocation4 + $0x60] sm:$0xff]
          %v1356 = vld [vmem:[#allocation4 + $0x68] sm:$0xff]
          %v1357 = vld [vmem:[#allocation4 + $0x70] sm:$0xff]
          %v1358 = vld [vmem:[#allocation4 + $0x78] sm:$0xff]
          %v1359 = vld [vmem:[#allocation7] sm:$0xff]
          %v1360 = vld [vmem:[#allocation7 + $0x8] sm:$0xff]
          %v1361 = vld [vmem:[#allocation7 + $0x10] sm:$0xff]
          %v1362 = vld [vmem:[#allocation7 + $0x18] sm:$0xff]
          %v1363 = vld [vmem:[#allocation7 + $0x20] sm:$0xff]
          %v1364 = vld [vmem:[#allocation7 + $0x28] sm:$0xff]
          %v1365 = vld [vmem:[#allocation7 + $0x30] sm:$0xff]
          %v1366 = vld [vmem:[#allocation7 + $0x38] sm:$0xff]
          %v1367 = vld [vmem:[#allocation7 + $0x40] sm:$0xff]
          %v1368 = vld [vmem:[#allocation7 + $0x48] sm:$0xff]
          %v1369 = vld [vmem:[#allocation7 + $0x50] sm:$0xff]
          %v1370 = vld [vmem:[#allocation7 + $0x58] sm:$0xff]
          %v1371 = vld [vmem:[#allocation7 + $0x60] sm:$0xff]
          %v1372 = vld [vmem:[#allocation7 + $0x68] sm:$0xff]
          %v1373 = vld [vmem:[#allocation7 + $0x70] sm:$0xff]
          %v1374 = vld [vmem:[#allocation7 + $0x78] sm:$0xff]
          %v1391 = vunpack.c.l.b16 %v1359
          %v1392 = vunpack.c.h.b16 %v1359
          %v1393 = vunpack.c.l.b16 %v1360
          %v1394 = vunpack.c.h.b16 %v1360
          %v1395 = vunpack.c.l.b16 %v1361
          %v1396 = vunpack.c.h.b16 %v1361
          %v1397 = vunpack.c.l.b16 %v1362
          %v1398 = vunpack.c.h.b16 %v1362
          %v1399 = vunpack.c.l.b16 %v1363
          %v1400 = vunpack.c.h.b16 %v1363
          %v1401 = vunpack.c.l.b16 %v1364
          %v1402 = vunpack.c.h.b16 %v1364
          %v1403 = vunpack.c.l.b16 %v1365
          %v1404 = vunpack.c.h.b16 %v1365
          %v1405 = vunpack.c.l.b16 %v1366
          %v1406 = vunpack.c.h.b16 %v1366
          %v1407 = vunpack.c.l.b16 %v1367
          %v1408 = vunpack.c.h.b16 %v1367
          %v1409 = vunpack.c.l.b16 %v1368
          %v1410 = vunpack.c.h.b16 %v1368
          %v1411 = vunpack.c.l.b16 %v1369
          %v1412 = vunpack.c.h.b16 %v1369
          %v1413 = vunpack.c.l.b16 %v1370
          %v1414 = vunpack.c.h.b16 %v1370
          %v1415 = vunpack.c.l.b16 %v1371
          %v1416 = vunpack.c.h.b16 %v1371
          %v1417 = vunpack.c.l.b16 %v1372
          %v1418 = vunpack.c.h.b16 %v1372
          %v1419 = vunpack.c.l.b16 %v1373
          %v1420 = vunpack.c.h.b16 %v1373
          %v1421 = vunpack.c.l.b16 %v1374
          %v1422 = vunpack.c.h.b16 %v1374
          %v1423 = vpack.c.b16 %v1393, %v1391
          %v1424 = vpack.c.b16 %v1394, %v1392
          %v1425 = vpack.c.b16 %v1397, %v1395
          %v1426 = vpack.c.b16 %v1398, %v1396
          %v1427 = vpack.c.b16 %v1401, %v1399
          %v1428 = vpack.c.b16 %v1402, %v1400
          %v1429 = vpack.c.b16 %v1405, %v1403
          %v1430 = vpack.c.b16 %v1406, %v1404
          %v1431 = vpack.c.b16 %v1409, %v1407
          %v1432 = vpack.c.b16 %v1410, %v1408
          %v1433 = vpack.c.b16 %v1413, %v1411
          %v1434 = vpack.c.b16 %v1414, %v1412
          %v1435 = vpack.c.b16 %v1417, %v1415
          %v1436 = vpack.c.b16 %v1418, %v1416
          %v1437 = vpack.c.b16 %v1421, %v1419
          %v1438 = vpack.c.b16 %v1422, %v1420
          %1455 = vmatprep.subr.bf16.mxu0 %v1424
          %1456 = vmatpush1.bf16.msra.mxu0 %v1423
          %1457 = vmatprep.subr.bf16.mxu0 %v1426
          %1458 = vmatpush1.bf16.msra.mxu0 %v1425
          %1459 = vmatprep.subr.bf16.mxu0 %v1428
          %1460 = vmatpush1.bf16.msra.mxu0 %v1427
          %1461 = vmatprep.subr.bf16.mxu0 %v1430
          %1462 = vmatpush1.bf16.msra.mxu0 %v1429
          %1463 = vmatprep.subr.bf16.mxu0 %v1432
          %1464 = vmatpush1.bf16.msra.mxu0 %v1431
          %1465 = vmatprep.subr.bf16.mxu0 %v1434
          %1466 = vmatpush1.bf16.msra.mxu0 %v1433
          %1467 = vmatprep.subr.bf16.mxu0 %v1436
          %1468 = vmatpush1.bf16.msra.mxu0 %v1435
          %1469 = vmatprep.subr.bf16.mxu0 %v1438
          %1470 = vmatpush1.bf16.msra.mxu0 %v1437
          %1471 = vmatprep.subr.bf16.mxu0 0
          %1472 = vmatpush1.bf16.msra.mxu0 0
          %1473 = vmatprep.subr.bf16.mxu0 0
          %1474 = vmatpush1.bf16.msra.mxu0 0
          %1475 = vmatprep.subr.bf16.mxu0 0
          %1476 = vmatpush1.bf16.msra.mxu0 0
          %1477 = vmatprep.subr.bf16.mxu0 0
          %1478 = vmatpush1.bf16.msra.mxu0 0
          %1479 = vmatprep.subr.bf16.mxu0 0
          %1480 = vmatpush1.bf16.msra.mxu0 0
          %1481 = vmatprep.subr.bf16.mxu0 0
          %1482 = vmatpush1.bf16.msra.mxu0 0
          %1483 = vmatprep.subr.bf16.mxu0 0
          %1484 = vmatpush1.bf16.msra.mxu0 0
          %1485 = vmatprep.subr.bf16.mxu0 0
          %1486 = vmatpush1.bf16.msra.mxu0 0
          %1487 = vmatprep.mubr.bf16.mxu0 0
          %1488 = vmatmul.mubr.bf16.gmra.mrb[0].mxu0 %v1335
          %v1489 = vpop.f32.mrb[0].mxu0
          %v1490 = vadd.f32 0.0, %v1489
          %v1491 = vpop.f32.mrb[0].mxu0
          %v1492 = vadd.f32 0.0, %v1491
          %v1493 = vpop.f32.mrb[0].mxu0
          %v1494 = vadd.f32 0.0, %v1493
          %v1495 = vpop.f32.mrb[0].mxu0
          %v1496 = vadd.f32 0.0, %v1495
          %1497 = vmatprep.mubr.bf16.mxu0 0
          %1498 = vmatmul.mubr.bf16.gmra.mrb[0].mxu0 %v1336
          %v1499 = vpop.f32.mrb[0].mxu0
          %v1500 = vadd.f32 0.0, %v1499
          %v1501 = vpop.f32.mrb[0].mxu0
          %v1502 = vadd.f32 0.0, %v1501
          %v1503 = vpop.f32.mrb[0].mxu0
          %v1504 = vadd.f32 0.0, %v1503
          %v1505 = vpop.f32.mrb[0].mxu0
          %v1506 = vadd.f32 0.0, %v1505
          %1507 = vmatprep.mubr.bf16.mxu0 0
          %1508 = vmatmul.mubr.bf16.gmra.mrb[0].mxu0 %v1337
          %v1509 = vpop.f32.mrb[0].mxu0
          %v1510 = vadd.f32 0.0, %v1509
          %v1511 = vpop.f32.mrb[0].mxu0
          %v1512 = vadd.f32 0.0, %v1511
          %v1513 = vpop.f32.mrb[0].mxu0
          %v1514 = vadd.f32 0.0, %v1513
          %v1515 = vpop.f32.mrb[0].mxu0
          %v1516 = vadd.f32 0.0, %v1515
          %1517 = vmatprep.mubr.bf16.mxu0 0
          %1518 = vmatmul.mubr.bf16.gmra.mrb[0].mxu0 %v1338
          %v1519 = vpop.f32.mrb[0].mxu0
          %v1520 = vadd.f32 0.0, %v1519
          %v1521 = vpop.f32.mrb[0].mxu0
          %v1522 = vadd.f32 0.0, %v1521
          %v1523 = vpop.f32.mrb[0].mxu0
          %v1524 = vadd.f32 0.0, %v1523
          %v1525 = vpop.f32.mrb[0].mxu0
          %v1526 = vadd.f32 0.0, %v1525
          %1527 = vmatprep.mubr.bf16.mxu0 0
          %1528 = vmatmul.mubr.bf16.gmra.mrb[0].mxu0 %v1339
          %v1529 = vpop.f32.mrb[0].mxu0
          %v1530 = vadd.f32 0.0, %v1529
          %v1531 = vpop.f32.mrb[0].mxu0
          %v1532 = vadd.f32 0.0, %v1531
          %v1533 = vpop.f32.mrb[0].mxu0
          %v1534 = vadd.f32 0.0, %v1533
          %v1535 = vpop.f32.mrb[0].mxu0
          %v1536 = vadd.f32 0.0, %v1535
          %1537 = vmatprep.mubr.bf16.mxu0 0
          %1538 = vmatmul.mubr.bf16.gmra.mrb[0].mxu0 %v1340
          %v1539 = vpop.f32.mrb[0].mxu0
          %v1540 = vadd.f32 0.0, %v1539
          %v1541 = vpop.f32.mrb[0].mxu0
          %v1542 = vadd.f32 0.0, %v1541
          %v1543 = vpop.f32.mrb[0].mxu0
          %v1544 = vadd.f32 0.0, %v1543
          %v1545 = vpop.f32.mrb[0].mxu0
          %v1546 = vadd.f32 0.0, %v1545
          %1547 = vmatprep.mubr.bf16.mxu0 0
          %1548 = vmatmul.mubr.bf16.gmra.mrb[0].mxu0 %v1341
          %v1549 = vpop.f32.mrb[0].mxu0
          %v1550 = vadd.f32 0.0, %v1549
          %v1551 = vpop.f32.mrb[0].mxu0
          %v1552 = vadd.f32 0.0, %v1551
          %v1553 = vpop.f32.mrb[0].mxu0
          %v1554 = vadd.f32 0.0, %v1553
          %v1555 = vpop.f32.mrb[0].mxu0
          %v1556 = vadd.f32 0.0, %v1555
          %1557 = vmatprep.mubr.bf16.mxu0 0
          %1558 = vmatmul.mubr.bf16.gmra.mrb[0].mxu0 %v1342
          %v1559 = vpop.f32.mrb[0].mxu0
          %v1560 = vadd.f32 0.0, %v1559
          %v1561 = vpop.f32.mrb[0].mxu0
          %v1562 = vadd.f32 0.0, %v1561
          %v1563 = vpop.f32.mrb[0].mxu0
          %v1564 = vadd.f32 0.0, %v1563
          %v1565 = vpop.f32.mrb[0].mxu0
          %v1566 = vadd.f32 0.0, %v1565
          %1567 = vdwg.mxu0
          %v1584 = vunpack.c.l.b16 %v1343
          %v1585 = vunpack.c.h.b16 %v1343
          %v1586 = vunpack.c.l.b16 %v1344
          %v1587 = vunpack.c.h.b16 %v1344
          %v1588 = vunpack.c.l.b16 %v1345
          %v1589 = vunpack.c.h.b16 %v1345
          %v1590 = vunpack.c.l.b16 %v1346
          %v1591 = vunpack.c.h.b16 %v1346
          %v1592 = vunpack.c.l.b16 %v1347
          %v1593 = vunpack.c.h.b16 %v1347
          %v1594 = vunpack.c.l.b16 %v1348
          %v1595 = vunpack.c.h.b16 %v1348
          %v1596 = vunpack.c.l.b16 %v1349
          %v1597 = vunpack.c.h.b16 %v1349
          %v1598 = vunpack.c.l.b16 %v1350
          %v1599 = vunpack.c.h.b16 %v1350
          %v1600 = vunpack.c.l.b16 %v1351
          %v1601 = vunpack.c.h.b16 %v1351
          %v1602 = vunpack.c.l.b16 %v1352
          %v1603 = vunpack.c.h.b16 %v1352
          %v1604 = vunpack.c.l.b16 %v1353
          %v1605 = vunpack.c.h.b16 %v1353
          %v1606 = vunpack.c.l.b16 %v1354
          %v1607 = vunpack.c.h.b16 %v1354
          %v1608 = vunpack.c.l.b16 %v1355
          %v1609 = vunpack.c.h.b16 %v1355
          %v1610 = vunpack.c.l.b16 %v1356
          %v1611 = vunpack.c.h.b16 %v1356
          %v1612 = vunpack.c.l.b16 %v1357
          %v1613 = vunpack.c.h.b16 %v1357
          %v1614 = vunpack.c.l.b16 %v1358
          %v1615 = vunpack.c.h.b16 %v1358
          %v1616 = vpack.c.b16 %v1586, %v1584
          %v1617 = vpack.c.b16 %v1587, %v1585
          %v1618 = vpack.c.b16 %v1590, %v1588
          %v1619 = vpack.c.b16 %v1591, %v1589
          %v1620 = vpack.c.b16 %v1594, %v1592
          %v1621 = vpack.c.b16 %v1595, %v1593
          %v1622 = vpack.c.b16 %v1598, %v1596
          %v1623 = vpack.c.b16 %v1599, %v1597
          %v1624 = vpack.c.b16 %v1602, %v1600
          %v1625 = vpack.c.b16 %v1603, %v1601
          %v1626 = vpack.c.b16 %v1606, %v1604
          %v1627 = vpack.c.b16 %v1607, %v1605
          %v1628 = vpack.c.b16 %v1610, %v1608
          %v1629 = vpack.c.b16 %v1611, %v1609
          %v1630 = vpack.c.b16 %v1614, %v1612
          %v1631 = vpack.c.b16 %v1615, %v1613
          %1648 = vmatprep.subr.bf16.mxu0 %v1617
          %1649 = vmatpush1.bf16.msra.mxu0 %v1616
          %1650 = vmatprep.subr.bf16.mxu0 %v1619
          %1651 = vmatpush1.bf16.msra.mxu0 %v1618
          %1652 = vmatprep.subr.bf16.mxu0 %v1621
          %1653 = vmatpush1.bf16.msra.mxu0 %v1620
          %1654 = vmatprep.subr.bf16.mxu0 %v1623
          %1655 = vmatpush1.bf16.msra.mxu0 %v1622
          %1656 = vmatprep.subr.bf16.mxu0 %v1625
          %1657 = vmatpush1.bf16.msra.mxu0 %v1624
          %1658 = vmatprep.subr.bf16.mxu0 %v1627
          %1659 = vmatpush1.bf16.msra.mxu0 %v1626
          %1660 = vmatprep.subr.bf16.mxu0 %v1629
          %1661 = vmatpush1.bf16.msra.mxu0 %v1628
          %1662 = vmatprep.subr.bf16.mxu0 %v1631
          %1663 = vmatpush1.bf16.msra.mxu0 %v1630
          %1664 = vmatprep.subr.bf16.mxu0 0
          %1665 = vmatpush1.bf16.msra.mxu0 0
          %1666 = vmatprep.subr.bf16.mxu0 0
          %1667 = vmatpush1.bf16.msra.mxu0 0
          %1668 = vmatprep.subr.bf16.mxu0 0
          %1669 = vmatpush1.bf16.msra.mxu0 0
          %1670 = vmatprep.subr.bf16.mxu0 0
          %1671 = vmatpush1.bf16.msra.mxu0 0
          %1672 = vmatprep.subr.bf16.mxu0 0
          %1673 = vmatpush1.bf16.msra.mxu0 0
          %1674 = vmatprep.subr.bf16.mxu0 0
          %1675 = vmatpush1.bf16.msra.mxu0 0
          %1676 = vmatprep.subr.bf16.mxu0 0
          %1677 = vmatpush1.bf16.msra.mxu0 0
          %1678 = vmatprep.subr.bf16.mxu0 0
          %1679 = vmatpush1.bf16.msra.mxu0 0
          %1680 = vmatprep.mubr.bf16.mxu0 0
          %1681 = vmatmul.mubr.bf16.gmra.mrb[0].mxu0 %v1199
          %v1682 = vpop.f32.mrb[0].mxu0
          %v1683 = vadd.f32 %v1490, %v1682
          %v1684 = vpop.f32.mrb[0].mxu0
          %v1685 = vadd.f32 %v1492, %v1684
          %v1686 = vpop.f32.mrb[0].mxu0
          %v1687 = vadd.f32 %v1494, %v1686
          %v1688 = vpop.f32.mrb[0].mxu0
          %v1689 = vadd.f32 %v1496, %v1688
          %1690 = vmatprep.mubr.bf16.mxu0 0
          %1691 = vmatmul.mubr.bf16.gmra.mrb[0].mxu0 %v1200
          %v1692 = vpop.f32.mrb[0].mxu0
          %v1693 = vadd.f32 %v1500, %v1692
          %v1694 = vpop.f32.mrb[0].mxu0
          %v1695 = vadd.f32 %v1502, %v1694
          %v1696 = vpop.f32.mrb[0].mxu0
          %v1697 = vadd.f32 %v1504, %v1696
          %v1698 = vpop.f32.mrb[0].mxu0
          %v1699 = vadd.f32 %v1506, %v1698
          %1700 = vmatprep.mubr.bf16.mxu0 0
          %1701 = vmatmul.mubr.bf16.gmra.mrb[0].mxu0 %v1201
          %v1702 = vpop.f32.mrb[0].mxu0
          %v1703 = vadd.f32 %v1510, %v1702
          %v1704 = vpop.f32.mrb[0].mxu0
          %v1705 = vadd.f32 %v1512, %v1704
          %v1706 = vpop.f32.mrb[0].mxu0
          %v1707 = vadd.f32 %v1514, %v1706
          %v1708 = vpop.f32.mrb[0].mxu0
          %v1709 = vadd.f32 %v1516, %v1708
          %1710 = vmatprep.mubr.bf16.mxu0 0
          %1711 = vmatmul.mubr.bf16.gmra.mrb[0].mxu0 %v1202
          %v1712 = vpop.f32.mrb[0].mxu0
          %v1713 = vadd.f32 %v1520, %v1712
          %v1714 = vpop.f32.mrb[0].mxu0
          %v1715 = vadd.f32 %v1522, %v1714
          %v1716 = vpop.f32.mrb[0].mxu0
          %v1717 = vadd.f32 %v1524, %v1716
          %v1718 = vpop.f32.mrb[0].mxu0
          %v1719 = vadd.f32 %v1526, %v1718
          %1720 = vmatprep.mubr.bf16.mxu0 0
          %1721 = vmatmul.mubr.bf16.gmra.mrb[0].mxu0 %v1203
          %v1722 = vpop.f32.mrb[0].mxu0
          %v1723 = vadd.f32 %v1530, %v1722
          %v1724 = vpop.f32.mrb[0].mxu0
          %v1725 = vadd.f32 %v1532, %v1724
          %v1726 = vpop.f32.mrb[0].mxu0
          %v1727 = vadd.f32 %v1534, %v1726
          %v1728 = vpop.f32.mrb[0].mxu0
          %v1729 = vadd.f32 %v1536, %v1728
          %1730 = vmatprep.mubr.bf16.mxu0 0
          %1731 = vmatmul.mubr.bf16.gmra.mrb[0].mxu0 %v1204
          %v1732 = vpop.f32.mrb[0].mxu0
          %v1733 = vadd.f32 %v1540, %v1732
          %v1734 = vpop.f32.mrb[0].mxu0
          %v1735 = vadd.f32 %v1542, %v1734
          %v1736 = vpop.f32.mrb[0].mxu0
          %v1737 = vadd.f32 %v1544, %v1736
          %v1738 = vpop.f32.mrb[0].mxu0
          %v1739 = vadd.f32 %v1546, %v1738
          %1740 = vmatprep.mubr.bf16.mxu0 0
          %1741 = vmatmul.mubr.bf16.gmra.mrb[0].mxu0 %v1205
          %v1742 = vpop.f32.mrb[0].mxu0
          %v1743 = vadd.f32 %v1550, %v1742
          %v1744 = vpop.f32.mrb[0].mxu0
          %v1745 = vadd.f32 %v1552, %v1744
          %v1746 = vpop.f32.mrb[0].mxu0
          %v1747 = vadd.f32 %v1554, %v1746
          %v1748 = vpop.f32.mrb[0].mxu0
          %v1749 = vadd.f32 %v1556, %v1748
          %1750 = vmatprep.mubr.bf16.mxu0 0
          %1751 = vmatmul.mubr.bf16.gmra.mrb[0].mxu0 %v1206
          %v1752 = vpop.f32.mrb[0].mxu0
          %v1753 = vadd.f32 %v1560, %v1752
          %v1754 = vpop.f32.mrb[0].mxu0
          %v1755 = vadd.f32 %v1562, %v1754
          %v1756 = vpop.f32.mrb[0].mxu0
          %v1757 = vadd.f32 %v1564, %v1756
          %v1758 = vpop.f32.mrb[0].mxu0
          %v1759 = vadd.f32 %v1566, %v1758
          %1760 = vdwg.mxu0
          %v1761 = vld [vmem:[%s550] sm:$0xf]
          %v1762 = vld [vmem:[%s550 + $0x4] sm:$0xf]
          %v1763 = vld [vmem:[%s550 + $0x8] sm:$0xf]
          %v1764 = vld [vmem:[%s550 + $0xc] sm:$0xf]
          %v1765 = vld [vmem:[%s550 + $0x10] sm:$0xf]
          %v1766 = vld [vmem:[%s550 + $0x14] sm:$0xf]
          %v1767 = vld [vmem:[%s550 + $0x18] sm:$0xf]
          %v1768 = vld [vmem:[%s550 + $0x1c] sm:$0xf]
          %v1769 = vld [vmem:[%s550 + $0x20] sm:$0xf]
          %v1770 = vld [vmem:[%s550 + $0x24] sm:$0xf]
          %v1771 = vld [vmem:[%s550 + $0x28] sm:$0xf]
          %v1772 = vld [vmem:[%s550 + $0x2c] sm:$0xf]
          %v1773 = vld [vmem:[%s550 + $0x30] sm:$0xf]
          %v1774 = vld [vmem:[%s550 + $0x34] sm:$0xf]
          %v1775 = vld [vmem:[%s550 + $0x38] sm:$0xf]
          %v1776 = vld [vmem:[%s550 + $0x3c] sm:$0xf]
          %v1777 = vld [vmem:[#allocation9] sm:$0xff]
          %v1778 = vld [vmem:[#allocation9 + $0x8] sm:$0xff]
          %v1779 = vld [vmem:[#allocation9 + $0x10] sm:$0xff]
          %v1780 = vld [vmem:[#allocation9 + $0x18] sm:$0xff]
          %v1781 = vld [vmem:[#allocation9 + $0x20] sm:$0xff]
          %v1782 = vld [vmem:[#allocation9 + $0x28] sm:$0xff]
          %v1783 = vld [vmem:[#allocation9 + $0x30] sm:$0xff]
          %v1784 = vld [vmem:[#allocation9 + $0x38] sm:$0xff]
          %v1785 = vld [vmem:[#allocation9 + $0x40] sm:$0xff]
          %v1786 = vld [vmem:[#allocation9 + $0x48] sm:$0xff]
          %v1787 = vld [vmem:[#allocation9 + $0x50] sm:$0xff]
          %v1788 = vld [vmem:[#allocation9 + $0x58] sm:$0xff]
          %v1789 = vld [vmem:[#allocation9 + $0x60] sm:$0xff]
          %v1790 = vld [vmem:[#allocation9 + $0x68] sm:$0xff]
          %v1791 = vld [vmem:[#allocation9 + $0x70] sm:$0xff]
          %v1792 = vld [vmem:[#allocation9 + $0x78] sm:$0xff]
          %v1809 = vunpack.c.l.b16 %v1761
          %v1810 = vunpack.c.l.b16 %v1762
          %v1811 = vunpack.c.l.b16 %v1763
          %v1812 = vunpack.c.l.b16 %v1764
          %v1813 = vunpack.c.l.b16 %v1765
          %v1814 = vunpack.c.l.b16 %v1766
          %v1815 = vunpack.c.l.b16 %v1767
          %v1816 = vunpack.c.l.b16 %v1768
          %v1817 = vunpack.c.l.b16 %v1769
          %v1818 = vunpack.c.l.b16 %v1770
          %v1819 = vunpack.c.l.b16 %v1771
          %v1820 = vunpack.c.l.b16 %v1772
          %v1821 = vunpack.c.l.b16 %v1773
          %v1822 = vunpack.c.l.b16 %v1774
          %v1823 = vunpack.c.l.b16 %v1775
          %v1824 = vunpack.c.l.b16 %v1776
          %v1825 = vpack.c.b16 %v1810, %v1809
          %v1826 = vpack.c.b16 %v1812, %v1811
          %v1827 = vpack.c.b16 %v1814, %v1813
          %v1828 = vpack.c.b16 %v1816, %v1815
          %v1829 = vpack.c.b16 %v1818, %v1817
          %v1830 = vpack.c.b16 %v1820, %v1819
          %v1831 = vpack.c.b16 %v1822, %v1821
          %v1832 = vpack.c.b16 %v1824, %v1823
          %v1857 = vunpack.c.l.b16 %v1777
          %v1858 = vunpack.c.h.b16 %v1777
          %v1859 = vunpack.c.l.b16 %v1778
          %v1860 = vunpack.c.h.b16 %v1778
          %v1861 = vunpack.c.l.b16 %v1779
          %v1862 = vunpack.c.h.b16 %v1779
          %v1863 = vunpack.c.l.b16 %v1780
          %v1864 = vunpack.c.h.b16 %v1780
          %v1865 = vunpack.c.l.b16 %v1781
          %v1866 = vunpack.c.h.b16 %v1781
          %v1867 = vunpack.c.l.b16 %v1782
          %v1868 = vunpack.c.h.b16 %v1782
          %v1869 = vunpack.c.l.b16 %v1783
          %v1870 = vunpack.c.h.b16 %v1783
          %v1871 = vunpack.c.l.b16 %v1784
          %v1872 = vunpack.c.h.b16 %v1784
          %v1873 = vunpack.c.l.b16 %v1785
          %v1874 = vunpack.c.h.b16 %v1785
          %v1875 = vunpack.c.l.b16 %v1786
          %v1876 = vunpack.c.h.b16 %v1786
          %v1877 = vunpack.c.l.b16 %v1787
          %v1878 = vunpack.c.h.b16 %v1787
          %v1879 = vunpack.c.l.b16 %v1788
          %v1880 = vunpack.c.h.b16 %v1788
          %v1881 = vunpack.c.l.b16 %v1789
          %v1882 = vunpack.c.h.b16 %v1789
          %v1883 = vunpack.c.l.b16 %v1790
          %v1884 = vunpack.c.h.b16 %v1790
          %v1885 = vunpack.c.l.b16 %v1791
          %v1886 = vunpack.c.h.b16 %v1791
          %v1887 = vunpack.c.l.b16 %v1792
          %v1888 = vunpack.c.h.b16 %v1792
          %v1889 = vpack.c.b16 %v1859, %v1857
          %v1890 = vpack.c.b16 %v1860, %v1858
          %v1891 = vpack.c.b16 %v1863, %v1861
          %v1892 = vpack.c.b16 %v1864, %v1862
          %v1893 = vpack.c.b16 %v1867, %v1865
          %v1894 = vpack.c.b16 %v1868, %v1866
          %v1895 = vpack.c.b16 %v1871, %v1869
          %v1896 = vpack.c.b16 %v1872, %v1870
          %v1897 = vpack.c.b16 %v1875, %v1873
          %v1898 = vpack.c.b16 %v1876, %v1874
          %v1899 = vpack.c.b16 %v1879, %v1877
          %v1900 = vpack.c.b16 %v1880, %v1878
          %v1901 = vpack.c.b16 %v1883, %v1881
          %v1902 = vpack.c.b16 %v1884, %v1882
          %v1903 = vpack.c.b16 %v1887, %v1885
          %v1904 = vpack.c.b16 %v1888, %v1886
          %1921 = vmatprep.subr.bf16.mxu0 %v1890
          %1922 = vmatpush1.bf16.msra.mxu0 %v1889
          %1923 = vmatprep.subr.bf16.mxu0 %v1892
          %1924 = vmatpush1.bf16.msra.mxu0 %v1891
          %1925 = vmatprep.subr.bf16.mxu0 %v1894
          %1926 = vmatpush1.bf16.msra.mxu0 %v1893
          %1927 = vmatprep.subr.bf16.mxu0 %v1896
          %1928 = vmatpush1.bf16.msra.mxu0 %v1895
          %1929 = vmatprep.subr.bf16.mxu0 %v1898
          %1930 = vmatpush1.bf16.msra.mxu0 %v1897
          %1931 = vmatprep.subr.bf16.mxu0 %v1900
          %1932 = vmatpush1.bf16.msra.mxu0 %v1899
          %1933 = vmatprep.subr.bf16.mxu0 %v1902
          %1934 = vmatpush1.bf16.msra.mxu0 %v1901
          %1935 = vmatprep.subr.bf16.mxu0 %v1904
          %1936 = vmatpush1.bf16.msra.mxu0 %v1903
          %1937 = vmatprep.subr.bf16.mxu0 0
          %1938 = vmatpush1.bf16.msra.mxu0 0
          %1939 = vmatprep.subr.bf16.mxu0 0
          %1940 = vmatpush1.bf16.msra.mxu0 0
          %1941 = vmatprep.subr.bf16.mxu0 0
          %1942 = vmatpush1.bf16.msra.mxu0 0
          %1943 = vmatprep.subr.bf16.mxu0 0
          %1944 = vmatpush1.bf16.msra.mxu0 0
          %1945 = vmatprep.subr.bf16.mxu0 0
          %1946 = vmatpush1.bf16.msra.mxu0 0
          %1947 = vmatprep.subr.bf16.mxu0 0
          %1948 = vmatpush1.bf16.msra.mxu0 0
          %1949 = vmatprep.subr.bf16.mxu0 0
          %1950 = vmatpush1.bf16.msra.mxu0 0
          %1951 = vmatprep.subr.bf16.mxu0 0
          %1952 = vmatpush1.bf16.msra.mxu0 0
          %1953 = vmatprep.mubr.bf16.mxu0 0
          %1954 = vmatmul.mubr.bf16.gmra.mrb[0].mxu0 %v1825
          %v1955 = vpop.f32.mrb[0].mxu0
          %v1956 = vadd.f32 0.0, %v1955
          %v1957 = vpop.f32.mrb[0].mxu0
          %v1958 = vadd.f32 0.0, %v1957
          %v1959 = vpop.f32.mrb[0].mxu0
          %v1960 = vadd.f32 0.0, %v1959
          %v1961 = vpop.f32.mrb[0].mxu0
          %v1962 = vadd.f32 0.0, %v1961
          %1963 = vmatprep.mubr.bf16.mxu0 0
          %1964 = vmatmul.mubr.bf16.gmra.mrb[0].mxu0 %v1826
          %v1965 = vpop.f32.mrb[0].mxu0
          %v1966 = vadd.f32 0.0, %v1965
          %v1967 = vpop.f32.mrb[0].mxu0
          %v1968 = vadd.f32 0.0, %v1967
          %v1969 = vpop.f32.mrb[0].mxu0
          %v1970 = vadd.f32 0.0, %v1969
          %v1971 = vpop.f32.mrb[0].mxu0
          %v1972 = vadd.f32 0.0, %v1971
          %1973 = vmatprep.mubr.bf16.mxu0 0
          %1974 = vmatmul.mubr.bf16.gmra.mrb[0].mxu0 %v1827
          %v1975 = vpop.f32.mrb[0].mxu0
          %v1976 = vadd.f32 0.0, %v1975
          %v1977 = vpop.f32.mrb[0].mxu0
          %v1978 = vadd.f32 0.0, %v1977
          %v1979 = vpop.f32.mrb[0].mxu0
          %v1980 = vadd.f32 0.0, %v1979
          %v1981 = vpop.f32.mrb[0].mxu0
          %v1982 = vadd.f32 0.0, %v1981
          %1983 = vmatprep.mubr.bf16.mxu0 0
          %1984 = vmatmul.mubr.bf16.gmra.mrb[0].mxu0 %v1828
          %v1985 = vpop.f32.mrb[0].mxu0
          %v1986 = vadd.f32 0.0, %v1985
          %v1987 = vpop.f32.mrb[0].mxu0
          %v1988 = vadd.f32 0.0, %v1987
          %v1989 = vpop.f32.mrb[0].mxu0
          %v1990 = vadd.f32 0.0, %v1989
          %v1991 = vpop.f32.mrb[0].mxu0
          %v1992 = vadd.f32 0.0, %v1991
          %1993 = vmatprep.mubr.bf16.mxu0 0
          %1994 = vmatmul.mubr.bf16.gmra.mrb[0].mxu0 %v1829
          %v1995 = vpop.f32.mrb[0].mxu0
          %v1996 = vadd.f32 0.0, %v1995
          %v1997 = vpop.f32.mrb[0].mxu0
          %v1998 = vadd.f32 0.0, %v1997
          %v1999 = vpop.f32.mrb[0].mxu0
          %v2000 = vadd.f32 0.0, %v1999
          %v2001 = vpop.f32.mrb[0].mxu0
          %v2002 = vadd.f32 0.0, %v2001
          %2003 = vmatprep.mubr.bf16.mxu0 0
          %2004 = vmatmul.mubr.bf16.gmra.mrb[0].mxu0 %v1830
          %v2005 = vpop.f32.mrb[0].mxu0
          %v2006 = vadd.f32 0.0, %v2005
          %v2007 = vpop.f32.mrb[0].mxu0
          %v2008 = vadd.f32 0.0, %v2007
          %v2009 = vpop.f32.mrb[0].mxu0
          %v2010 = vadd.f32 0.0, %v2009
          %v2011 = vpop.f32.mrb[0].mxu0
          %v2012 = vadd.f32 0.0, %v2011
          %2013 = vmatprep.mubr.bf16.mxu0 0
          %2014 = vmatmul.mubr.bf16.gmra.mrb[0].mxu0 %v1831
          %v2015 = vpop.f32.mrb[0].mxu0
          %v2016 = vadd.f32 0.0, %v2015
          %v2017 = vpop.f32.mrb[0].mxu0
          %v2018 = vadd.f32 0.0, %v2017
          %v2019 = vpop.f32.mrb[0].mxu0
          %v2020 = vadd.f32 0.0, %v2019
          %v2021 = vpop.f32.mrb[0].mxu0
          %v2022 = vadd.f32 0.0, %v2021
          %2023 = vmatprep.mubr.bf16.mxu0 0
          %2024 = vmatmul.mubr.bf16.gmra.mrb[0].mxu0 %v1832
          %v2025 = vpop.f32.mrb[0].mxu0
          %v2026 = vadd.f32 0.0, %v2025
          %v2027 = vpop.f32.mrb[0].mxu0
          %v2028 = vadd.f32 0.0, %v2027
          %v2029 = vpop.f32.mrb[0].mxu0
          %v2030 = vadd.f32 0.0, %v2029
          %v2031 = vpop.f32.mrb[0].mxu0
          %v2032 = vadd.f32 0.0, %v2031
          %2033 = vdwg.mxu0
          %v2034 = vadd.f32 %v1683, %v1956
          %v2035 = vadd.f32 %v1685, %v1958
          %v2036 = vadd.f32 %v1687, %v1960
          %v2037 = vadd.f32 %v1689, %v1962
          %v2038 = vadd.f32 %v1693, %v1966
          %v2039 = vadd.f32 %v1695, %v1968
          %v2040 = vadd.f32 %v1697, %v1970
          %v2041 = vadd.f32 %v1699, %v1972
          %v2042 = vadd.f32 %v1703, %v1976
          %v2043 = vadd.f32 %v1705, %v1978
          %v2044 = vadd.f32 %v1707, %v1980
          %v2045 = vadd.f32 %v1709, %v1982
          %v2046 = vadd.f32 %v1713, %v1986
          %v2047 = vadd.f32 %v1715, %v1988
          %v2048 = vadd.f32 %v1717, %v1990
          %v2049 = vadd.f32 %v1719, %v1992
          %v2050 = vadd.f32 %v1723, %v1996
          %v2051 = vadd.f32 %v1725, %v1998
          %v2052 = vadd.f32 %v1727, %v2000
          %v2053 = vadd.f32 %v1729, %v2002
          %v2054 = vadd.f32 %v1733, %v2006
          %v2055 = vadd.f32 %v1735, %v2008
          %v2056 = vadd.f32 %v1737, %v2010
          %v2057 = vadd.f32 %v1739, %v2012
          %v2058 = vadd.f32 %v1743, %v2016
          %v2059 = vadd.f32 %v1745, %v2018
          %v2060 = vadd.f32 %v1747, %v2020
          %v2061 = vadd.f32 %v1749, %v2022
          %v2062 = vadd.f32 %v1753, %v2026
          %v2063 = vadd.f32 %v1755, %v2028
          %v2064 = vadd.f32 %v1757, %v2030
          %v2065 = vadd.f32 %v1759, %v2032
          %v2066 = vld [vmem:[%s9] sm:$0x3]
          %v2068 = vlaneseq
          %v2069 = vshrl.u32 %v2068, 7
          %v2070 = vsub.s32 0, %v2069
          %v2071 = vrot.slane %v2066, %v2070
          %v2072 = vlaneseq
          %v2073 = vshrl.u32 %v2072, 7
          %v2074 = vsub.s32 1, %v2073
          %v2075 = vrot.slane %v2066, %v2074
          %v2078 = vadd.f32 %v2034, %v2071
          %v2079 = vadd.f32 %v2035, %v2075
          %v2080 = vadd.f32 %v2036, %v2071
          %v2081 = vadd.f32 %v2037, %v2075
          %v2082 = vadd.f32 %v2038, %v2071
          %v2083 = vadd.f32 %v2039, %v2075
          %v2084 = vadd.f32 %v2040, %v2071
          %v2085 = vadd.f32 %v2041, %v2075
          %v2086 = vadd.f32 %v2042, %v2071
          %v2087 = vadd.f32 %v2043, %v2075
          %v2088 = vadd.f32 %v2044, %v2071
          %v2089 = vadd.f32 %v2045, %v2075
          %v2090 = vadd.f32 %v2046, %v2071
          %v2091 = vadd.f32 %v2047, %v2075
          %v2092 = vadd.f32 %v2048, %v2071
          %v2093 = vadd.f32 %v2049, %v2075
          %v2094 = vadd.f32 %v2050, %v2071
          %v2095 = vadd.f32 %v2051, %v2075
          %v2096 = vadd.f32 %v2052, %v2071
          %v2097 = vadd.f32 %v2053, %v2075
          %v2098 = vadd.f32 %v2054, %v2071
          %v2099 = vadd.f32 %v2055, %v2075
          %v2100 = vadd.f32 %v2056, %v2071
          %v2101 = vadd.f32 %v2057, %v2075
          %v2102 = vadd.f32 %v2058, %v2071
          %v2103 = vadd.f32 %v2059, %v2075
          %v2104 = vadd.f32 %v2060, %v2071
          %v2105 = vadd.f32 %v2061, %v2075
          %v2106 = vadd.f32 %v2062, %v2071
          %v2107 = vadd.f32 %v2063, %v2075
          %v2108 = vadd.f32 %v2064, %v2071
          %v2109 = vadd.f32 %v2065, %v2075
          %v2110 = vmax.f32 %v2078, 0.0
          %v2111 = vmax.f32 %v2079, 0.0
          %v2112 = vmax.f32 %v2080, 0.0
          %v2113 = vmax.f32 %v2081, 0.0
          %v2114 = vmax.f32 %v2082, 0.0
          %v2115 = vmax.f32 %v2083, 0.0
          %v2116 = vmax.f32 %v2084, 0.0
          %v2117 = vmax.f32 %v2085, 0.0
          %v2118 = vmax.f32 %v2086, 0.0
          %v2119 = vmax.f32 %v2087, 0.0
          %v2120 = vmax.f32 %v2088, 0.0
          %v2121 = vmax.f32 %v2089, 0.0
          %v2122 = vmax.f32 %v2090, 0.0
          %v2123 = vmax.f32 %v2091, 0.0
          %v2124 = vmax.f32 %v2092, 0.0
          %v2125 = vmax.f32 %v2093, 0.0
          %v2126 = vmax.f32 %v2094, 0.0
          %v2127 = vmax.f32 %v2095, 0.0
          %v2128 = vmax.f32 %v2096, 0.0
          %v2129 = vmax.f32 %v2097, 0.0
          %v2130 = vmax.f32 %v2098, 0.0
          %v2131 = vmax.f32 %v2099, 0.0
          %v2132 = vmax.f32 %v2100, 0.0
          %v2133 = vmax.f32 %v2101, 0.0
          %v2134 = vmax.f32 %v2102, 0.0
          %v2135 = vmax.f32 %v2103, 0.0
          %v2136 = vmax.f32 %v2104, 0.0
          %v2137 = vmax.f32 %v2105, 0.0
          %v2138 = vmax.f32 %v2106, 0.0
          %v2139 = vmax.f32 %v2107, 0.0
          %v2140 = vmax.f32 %v2108, 0.0
          %v2141 = vmax.f32 %v2109, 0.0
          %v2142 = vpack.c.bf16 %v2112, %v2110
          %v2143 = vpack.c.bf16 %v2113, %v2111
          %v2144 = vpack.c.bf16 %v2116, %v2114
          %v2145 = vpack.c.bf16 %v2117, %v2115
          %v2146 = vpack.c.bf16 %v2120, %v2118
          %v2147 = vpack.c.bf16 %v2121, %v2119
          %v2148 = vpack.c.bf16 %v2124, %v2122
          %v2149 = vpack.c.bf16 %v2125, %v2123
          %v2150 = vpack.c.bf16 %v2128, %v2126
          %v2151 = vpack.c.bf16 %v2129, %v2127
          %v2152 = vpack.c.bf16 %v2132, %v2130
          %v2153 = vpack.c.bf16 %v2133, %v2131
          %v2154 = vpack.c.bf16 %v2136, %v2134
          %v2155 = vpack.c.bf16 %v2137, %v2135
          %v2156 = vpack.c.bf16 %v2140, %v2138
          %v2157 = vpack.c.bf16 %v2141, %v2139
          %v2174 = vunpack.c.l.b16 %v2142
          %v2175 = vunpack.c.l.b16 %v2143
          %v2176 = vunpack.c.h.b16 %v2142
          %v2177 = vunpack.c.h.b16 %v2143
          %v2178 = vunpack.c.l.b16 %v2144
          %v2179 = vunpack.c.l.b16 %v2145
          %v2180 = vunpack.c.h.b16 %v2144
          %v2181 = vunpack.c.h.b16 %v2145
          %v2182 = vunpack.c.l.b16 %v2146
          %v2183 = vunpack.c.l.b16 %v2147
          %v2184 = vunpack.c.h.b16 %v2146
          %v2185 = vunpack.c.h.b16 %v2147
          %v2186 = vunpack.c.l.b16 %v2148
          %v2187 = vunpack.c.l.b16 %v2149
          %v2188 = vunpack.c.h.b16 %v2148
          %v2189 = vunpack.c.h.b16 %v2149
          %v2190 = vunpack.c.l.b16 %v2150
          %v2191 = vunpack.c.l.b16 %v2151
          %v2192 = vunpack.c.h.b16 %v2150
          %v2193 = vunpack.c.h.b16 %v2151
          %v2194 = vunpack.c.l.b16 %v2152
          %v2195 = vunpack.c.l.b16 %v2153
          %v2196 = vunpack.c.h.b16 %v2152
          %v2197 = vunpack.c.h.b16 %v2153
          %v2198 = vunpack.c.l.b16 %v2154
          %v2199 = vunpack.c.l.b16 %v2155
          %v2200 = vunpack.c.h.b16 %v2154
          %v2201 = vunpack.c.h.b16 %v2155
          %v2202 = vunpack.c.l.b16 %v2156
          %v2203 = vunpack.c.l.b16 %v2157
          %v2204 = vunpack.c.h.b16 %v2156
          %v2205 = vunpack.c.h.b16 %v2157
          %v2206 = vpack.c.b16 %v2175, %v2174
          %v2207 = vpack.c.b16 %v2177, %v2176
          %v2208 = vpack.c.b16 %v2179, %v2178
          %v2209 = vpack.c.b16 %v2181, %v2180
          %v2210 = vpack.c.b16 %v2183, %v2182
          %v2211 = vpack.c.b16 %v2185, %v2184
          %v2212 = vpack.c.b16 %v2187, %v2186
          %v2213 = vpack.c.b16 %v2189, %v2188
          %v2214 = vpack.c.b16 %v2191, %v2190
          %v2215 = vpack.c.b16 %v2193, %v2192
          %v2216 = vpack.c.b16 %v2195, %v2194
          %v2217 = vpack.c.b16 %v2197, %v2196
          %v2218 = vpack.c.b16 %v2199, %v2198
          %v2219 = vpack.c.b16 %v2201, %v2200
          %v2220 = vpack.c.b16 %v2203, %v2202
          %v2221 = vpack.c.b16 %v2205, %v2204
          %2238 = vst [vmem:[%s515] sm:$0xff] %v2206
          %2239 = vst [vmem:[%s515 + $0x8] sm:$0xff] %v2207
          %2240 = vst [vmem:[%s515 + $0x10] sm:$0xff] %v2208
          %2241 = vst [vmem:[%s515 + $0x18] sm:$0xff] %v2209
          %2242 = vst [vmem:[%s515 + $0x20] sm:$0xff] %v2210
          %2243 = vst [vmem:[%s515 + $0x28] sm:$0xff] %v2211
          %2244 = vst [vmem:[%s515 + $0x30] sm:$0xff] %v2212
          %2245 = vst [vmem:[%s515 + $0x38] sm:$0xff] %v2213
          %2246 = vst [vmem:[%s515 + $0x40] sm:$0xff] %v2214
          %2247 = vst [vmem:[%s515 + $0x48] sm:$0xff] %v2215
          %2248 = vst [vmem:[%s515 + $0x50] sm:$0xff] %v2216
          %2249 = vst [vmem:[%s515 + $0x58] sm:$0xff] %v2217
          %2250 = vst [vmem:[%s515 + $0x60] sm:$0xff] %v2218
          %2251 = vst [vmem:[%s515 + $0x68] sm:$0xff] %v2219
          %2252 = vst [vmem:[%s515 + $0x70] sm:$0xff] %v2220
          %2253 = vst [vmem:[%s515 + $0x78] sm:$0xff] %v2221
        $region80: #{tpu_custom_call.1} parent=59 // pred_fallthru
          _
        %s2254 = sand.u32 %s290, 1
        %s2255 = scalar_lea.sflag [#allocation6], %s2254
        %s2256 = sand.u32 %s290, 1
        %s2257 = smul.addr %s2256, 128
        %s2258 = scalar_lea.vmem [#allocation10], %s2257
        // Predicated region
        $region81: #{tpu_custom_call.1} parent=59 // pred_check
          %p2259 = pneg %p300
        $region82: #{tpu_custom_call.1} parent=59 // pred_check_branch
          %2261 = sbr.rel (%p2259) target = $region84
        $region83: #{tpu_custom_call.1} parent=59 // pred_region
          %s2262 = smul.u32 16, %s30
          %s2264 = ssub.s32 2048, 2048
          %2265 = vsyncadd %s2255, %s2264
          %s2266 = smul.addr %s2262, 2
          %s2267 = smul.addr %s2266, 64
          %s2268 = scalar_lea.hbm %s10, %s2267
          %s2269 = sshll.u32 %s2258, 4
          %s2270 = int_to_ptr.vmem [resolvable:$true] %s2269
          %2275 = dma.vmem_to_hbm [thread:$0]  %s2270, 2048, %s2268, %s2255, 128, 128, 8
        $region84: #{tpu_custom_call.1} parent=59 // pred_fallthru
          _
      $region60: #{tpu_custom_call.1} parent=5 // pred_fallthru
        _
      %p2276 = scmp.le.s32.totalorder 2, %s21
      // Predicated region
      $region85: #{tpu_custom_call.1} parent=5 // pred_check
        %p2277 = pneg %p2276
      $region86: #{tpu_custom_call.1} parent=5 // pred_check_branch
        %2279 = sbr.rel (%p2277) target = $region88
      $region87: #{tpu_custom_call.1} parent=5 // pred_region
        %s2280 = ssub.s32 %s21, 2
        // Predicated region
        $region89: #{tpu_custom_call.1} parent=87 // pred_check
          %p2281 = pneg %p306
        $region90: #{tpu_custom_call.1} parent=87 // pred_check_branch
          %2283 = sbr.rel (%p2281) target = $region92
        $region91: #{tpu_custom_call.1} parent=87 // pred_region
          %s2284 = sand.u32 %s291, 1
          %s2285 = scalar_lea.sflag [#allocation6], %s2284
          %s2286 = sand.u32 %s291, 1
          %s2287 = smul.addr %s2286, 128
          %s2288 = scalar_lea.vmem [#allocation10], %s2287
          %2289 = dma.done %s2285, 2048
        $region92: #{tpu_custom_call.1} parent=87 // pred_fallthru
          _
      $region88: #{tpu_custom_call.1} parent=5 // pred_fallthru
        _
    $region6: #{tpu_custom_call.1} parent=1 // loop_footer
      %s25 = sadd.s32 1, %s21
    $region7: #{tpu_custom_call.1} parent=1 // loop_footer_branch
      %20 = sbr.rel target = $region3
    $region8: #{tpu_custom_call.1} parent=1 // loop_exit
      _
    %2290 = vsyncpa [#allocation5], 1
    %s2291 = scalar_lea.sflag [#allocation5], 1
    %2292 = vsyncpa %s2291, 1
    %2293 = vsyncpa [#allocation8], 1
    %2294 = vsyncpa [#allocation6], 1
    %s2295 = scalar_lea.sflag [#allocation6], 1
    %2296 = vsyncpa %s2295, 1

</llo_original>
